<compile_context>
chip_gen: v6e
topology: v6e:2x2x1
jax: 0.10.0
libtpu: 0.0.40
codegen_flags: <defaults>
</compile_context>

<pallas_src>
import functools
import math

import jax
import jax.numpy as jnp
from jax.experimental import pallas as pl
from jax.experimental.pallas import tpu as pltpu


_NEG = jnp.float32(-1e30)          # finite "minus infinity" for masks
_EPS = 1e-5                        # nn.Transformer layer_norm_eps default
_VMEM_LIMIT = 64 * 1024 * 1024     # scoped-VMEM cap (actual usage is far smaller)


# ---------------------------------------------------------------------------
# tiling helpers
# ---------------------------------------------------------------------------

def _row_tile(m, pref=512):
    """Row tile: full extent when small, else the largest multiple-of-8
    divisor of m that is <= pref."""
    if m <= pref or m % 8 != 0:
        return m
    t = pref - (pref % 8)
    while t >= 8:
        if m % t == 0:
            return t
        t -= 8
    return m


def _col_tile(v, pref=512):
    """Vocab tile: full extent when small, else a fixed lane-dense 512 tile
    (pl.cdiv + Pallas remainder masking handle non-divisible vocabs)."""
    return v if v <= pref else pref


def _batch_tile(n, l, target_rows=256):
    """Batch elements per MHA grid step so that Bt*L >= ~target_rows."""
    bt = max(1, min(n, max(1, target_rows // max(l, 1))))
    while n % bt != 0:
        bt -= 1
    return bt


def _layernorm(y, g, b):
    mu = jnp.mean(y, axis=-1, keepdims=True)
    var = jnp.mean((y - mu) ** 2, axis=-1, keepdims=True)
    return (y - mu) * jax.lax.rsqrt(var + _EPS) * g + b


# ---------------------------------------------------------------------------
# Pallas kernels
# ---------------------------------------------------------------------------

def _mha_ln_kernel(x_ref, kv_ref, wq_ref, bq_ref, wkv_ref, bkv_ref,
                   wo_ref, bo_ref, mask_ref, kpm_ref, g_ref, b_ref,
                   o_ref, ctx_ref, *, nhead):
    """Fused attention sub-layer for Bt batch elements (post-norm):
       LN(x + OutProj(MultiHeadAttention(x, kv, kv)))."""
    bt, lq, e = x_ref.shape
    lk = kv_ref.shape[1]
    dh = e // nhead
    scale = 1.0 / math.sqrt(dh)

    x = x_ref[...].reshape(bt * lq, e)                    # (Bt*Lq, E) f32
    src = kv_ref[...].reshape(bt * lk, e)                 # (Bt*Lk, E) f32

    # fused projections: q and [k|v] (bf16 weights, f32 accumulation)
    q = jnp.dot(x.astype(jnp.bfloat16), wq_ref[...],
                preferred_element_type=jnp.float32) + bq_ref[...]
    kvp = jnp.dot(src.astype(jnp.bfloat16), wkv_ref[...],
                  preferred_element_type=jnp.float32) + bkv_ref[...]
    q = (q * scale).reshape(bt, lq, e)                    # fold 1/sqrt(dh) into q
    kvp = kvp.reshape(bt, lk, 2 * e)

    mask = mask_ref[0]                                    # (Lq, Lk)
    for b in range(bt):                                   # static unrolled loops
        m = mask + kpm_ref[b]                             # (Lq,Lk) + (1,Lk)
        for h in range(nhead):
            sl = slice(h * dh, (h + 1) * dh)
            qh = q[b, :, sl].astype(jnp.bfloat16)
            kh = kvp[b, :, sl].astype(jnp.bfloat16)
            vh = kvp[b, :, e + h * dh:e + (h + 1) * dh].astype(jnp.bfloat16)
            s = jax.lax.dot_general(qh, kh, (((1,), (1,)), ((), ())),
                                    preferred_element_type=jnp.float32)
            s = s + m
            s = s - jnp.max(s, axis=-1, keepdims=True)
            p = jnp.exp(s)
            p = p * pl.reciprocal(jnp.sum(p, axis=-1, keepdims=True), approx=True)
            oh = jnp.dot(p.astype(jnp.bfloat16), vh,
                         preferred_element_type=jnp.float32)     # (Lq, dh)
            ctx_ref[b, :, sl] = oh                               # concat-of-heads

    # single concat-of-heads output projection (K = E -> full MXU fill)
    ctx = ctx_ref[...].reshape(bt * lq, e)
    attn = jnp.dot(ctx.astype(jnp.bfloat16), wo_ref[...],
                   preferred_element_type=jnp.float32) + bo_ref[...]
    y = x + attn                                          # post-norm residual
    out = _layernorm(y, g_ref[...], b_ref[...])
    o_ref[...] = out.reshape(bt, lq, e).astype(o_ref.dtype)


def _ffn_ln_kernel(x_ref, w1_ref, b1_ref, w2_ref, b2_ref, g_ref, bln_ref,
                   g2_ref, b2ln_ref, o_ref, *, final_ln):
    """Fused feed-forward sub-layer: LN(x + ReLU(x@W1+b1)@W2 + b2), optionally
    followed by a second LayerNorm (fused encoder-final norm)."""
    x = x_ref[...]                                        # (tm, E) f32
    h = jnp.dot(x.astype(jnp.bfloat16), w1_ref[...],
                preferred_element_type=jnp.float32) + b1_ref[...]
    h = jnp.maximum(h, 0.0)
    ff = jnp.dot(h.astype(jnp.bfloat16), w2_ref[...],
                 preferred_element_type=jnp.float32) + b2_ref[...]
    y = _layernorm(x + ff, g_ref[...], bln_ref[...])
    if final_ln:
        y = _layernorm(y, g2_ref[...], b2ln_ref[...])
    o_ref[...] = y.astype(o_ref.dtype)


def _ln_kernel(x_ref, g_ref, b_ref, o_ref):
    """Standalone LayerNorm (only used if there are zero encoder layers)."""
    o_ref[...] = _layernorm(x_ref[...], g_ref[...], b_ref[...]).astype(o_ref.dtype)


def _ln_linear_kernel(x_ref, g_ref, b_ref, w_ref, bias_ref, o_ref):
    """Generator fused with the final decoder LayerNorm: LN(x) @ W + b."""
    xn = _layernorm(x_ref[...], g_ref[...], b_ref[...])
    o_ref[...] = (jnp.dot(xn.astype(jnp.bfloat16), w_ref[...],
                          preferred_element_type=jnp.float32)
                  + bias_ref[...]).astype(o_ref.dtype)


# ---------------------------------------------------------------------------
# Pallas wrappers
# ---------------------------------------------------------------------------

def mha_block(x, kv, attn_mask, kpm_bias, p, nhead, gamma, beta):
    """x:(N,Lq,E) query/residual input, kv:(N,Lk,E) key/value source."""
    n, lq, e = x.shape
    lk = kv.shape[1]
    bt = _batch_tile(n, lq)

    if attn_mask is None:
        am = jnp.zeros((1, lq, lk), jnp.float32)
    else:
        am = jnp.maximum(attn_mask.astype(jnp.float32), _NEG)[None]
    if kpm_bias is None:
        kp = jnp.zeros((n, 1, lk), jnp.float32)
    else:
        kp = kpm_bias.reshape(n, 1, lk)

    return pl.pallas_call(
        functools.partial(_mha_ln_kernel, nhead=nhead),
        out_shape=jax.ShapeDtypeStruct((n, lq, e), x.dtype),
        grid=(n // bt,),
        in_specs=[
            pl.BlockSpec((bt, lq, e), lambda i: (i, 0, 0)),      # x
            pl.BlockSpec((bt, lk, e), lambda i: (i, 0, 0)),      # kv source
            pl.BlockSpec((e, e), lambda i: (0, 0)),              # wq (bf16)
            pl.BlockSpec((1, e), lambda i: (0, 0)),              # bq
            pl.BlockSpec((e, 2 * e), lambda i: (0, 0)),          # wkv (bf16)
            pl.BlockSpec((1, 2 * e), lambda i: (0, 0)),          # bkv
            pl.BlockSpec((e, e), lambda i: (0, 0)),              # wo (bf16)
            pl.BlockSpec((1, e), lambda i: (0, 0)),              # bo
            pl.BlockSpec((1, lq, lk), lambda i: (0, 0, 0)),      # shared mask
            pl.BlockSpec((bt, 1, lk), lambda i: (i, 0, 0)),      # padding bias
            pl.BlockSpec((1, e), lambda i: (0, 0)),              # ln gamma
            pl.BlockSpec((1, e), lambda i: (0, 0)),              # ln beta
        ],
        out_specs=pl.BlockSpec((bt, lq, e), lambda i: (i, 0, 0)),
        scratch_shapes=[pltpu.VMEM((bt, lq, e), jnp.float32)],   # head context
        compiler_params=pltpu.CompilerParams(
            dimension_semantics=("parallel",),
            vmem_limit_bytes=_VMEM_LIMIT),
    )(x, kv,
      p["wq"].astype(jnp.bfloat16), p["bq"].reshape(1, e),
      p["wkv"].astype(jnp.bfloat16), p["bkv"].reshape(1, 2 * e),
      p["wo"].astype(jnp.bfloat16), p["bo"].reshape(1, e),
      am, kp, gamma.reshape(1, e), beta.reshape(1, e))


def ffn_block(x2d, w1, b1, w2, b2, gamma, beta, extra_g=None, extra_b=None):
    """LN(x + ReLU(x@W1+b1)@W2 + b2) [optionally followed by a second LN]."""
    m, e = x2d.shape
    dff = w1.shape[1]
    tm = _row_tile(m)
    final_ln = extra_g is not None
    g2 = (extra_g if final_ln else gamma).reshape(1, e)
    b2n = (extra_b if final_ln else beta).reshape(1, e)
    return pl.pallas_call(
        functools.partial(_ffn_ln_kernel, final_ln=final_ln),
        out_shape=jax.ShapeDtypeStruct((m, e), x2d.dtype),
        grid=(m // tm,),
        in_specs=[pl.BlockSpec((tm, e), lambda i: (i, 0)),
                  pl.BlockSpec((e, dff), lambda i: (0, 0)),      # w1 (bf16)
                  pl.BlockSpec((1, dff), lambda i: (0, 0)),
                  pl.BlockSpec((dff, e), lambda i: (0, 0)),      # w2 (bf16)
                  pl.BlockSpec((1, e), lambda i: (0, 0)),
                  pl.BlockSpec((1, e), lambda i: (0, 0)),
                  pl.BlockSpec((1, e), lambda i: (0, 0)),
                  pl.BlockSpec((1, e), lambda i: (0, 0)),
                  pl.BlockSpec((1, e), lambda i: (0, 0))],
        out_specs=pl.BlockSpec((tm, e), lambda i: (i, 0)),
        compiler_params=pltpu.CompilerParams(
            dimension_semantics=("parallel",),
            vmem_limit_bytes=_VMEM_LIMIT),
    )(x2d, w1.astype(jnp.bfloat16), b1.reshape(1, dff),
      w2.astype(jnp.bfloat16), b2.reshape(1, e),
      gamma.reshape(1, e), beta.reshape(1, e), g2, b2n)


def layernorm(x2d, gamma, beta):
    """Standalone LayerNorm (only used when there are zero encoder layers)."""
    m, e = x2d.shape
    tm = _row_tile(m)
    return pl.pallas_call(
        _ln_kernel,
        out_shape=jax.ShapeDtypeStruct((m, e), x2d.dtype),
        grid=(m // tm,),
        in_specs=[pl.BlockSpec((tm, e), lambda i: (i, 0)),
                  pl.BlockSpec((1, e), lambda i: (0, 0)),
                  pl.BlockSpec((1, e), lambda i: (0, 0))],
        out_specs=pl.BlockSpec((tm, e), lambda i: (i, 0)),
        compiler_params=pltpu.CompilerParams(
            dimension_semantics=("parallel",),
            vmem_limit_bytes=_VMEM_LIMIT),
    )(x2d, gamma.reshape(1, e), beta.reshape(1, e))


def ln_linear(x2d, gamma, beta, w, b):
    """Generator: LN(x) @ W + b.  Vocab axis OUTER so the (E, tn) weight tile
    is stationary while the small activation tiles re-stream."""
    m, e = x2d.shape
    v = w.shape[1]
    tm = _row_tile(m)
    tn = _col_tile(v)
    return pl.pallas_call(
        _ln_linear_kernel,
        out_shape=jax.ShapeDtypeStruct((m, v), x2d.dtype),
        grid=(pl.cdiv(v, tn), pl.cdiv(m, tm)),
        in_specs=[pl.BlockSpec((tm, e), lambda j, i: (i, 0)),
                  pl.BlockSpec((1, e), lambda j, i: (0, 0)),
                  pl.BlockSpec((1, e), lambda j, i: (0, 0)),
                  pl.BlockSpec((e, tn), lambda j, i: (0, j)),    # W (bf16), stationary
                  pl.BlockSpec((1, tn), lambda j, i: (0, j))],
        out_specs=pl.BlockSpec((tm, tn), lambda j, i: (i, j)),
        compiler_params=pltpu.CompilerParams(
            dimension_semantics=("parallel", "parallel"),
            vmem_limit_bytes=_VMEM_LIMIT),
    )(x2d, gamma.reshape(1, e), beta.reshape(1, e),
      w.astype(jnp.bfloat16), b.reshape(1, v))


# ---------------------------------------------------------------------------
# Transformer forward (glue around the Pallas kernels)
# ---------------------------------------------------------------------------

def make_pos_embedding(emb_size, maxlen=5000):
    den = jnp.exp(-jnp.arange(0, emb_size, 2, dtype=jnp.float32)
                  * math.log(10000.0) / emb_size)
    pos = jnp.arange(0, maxlen, dtype=jnp.float32).reshape(maxlen, 1)
    pe = jnp.zeros((maxlen, emb_size), jnp.float32)
    pe = pe.at[:, 0::2].set(jnp.sin(pos * den))
    pe = pe.at[:, 1::2].set(jnp.cos(pos * den))
    return pe[:, None, :]           # (maxlen, 1, emb_size)


def _kpm_bias(padding_mask):
    if padding_mask is None:
        return None
    return jnp.where(padding_mask, _NEG, jnp.float32(0.0)).astype(jnp.float32)


def seq2seq_transformer_forward(params, cfg, src, trg, src_mask, tgt_mask,
                                src_padding_mask, tgt_padding_mask,
                                memory_key_padding_mask):
    E, H = cfg["emb_size"], cfg["nhead"]
    pe = params["pos_embedding"]
    S, N = src.shape
    T = trg.shape[0]

    # token embedding * sqrt(E) + positional encoding (dropout = identity)
    src_emb = jnp.take(params["src_emb"], src, axis=0) * math.sqrt(E) + pe[:S]
    tgt_emb = jnp.take(params["tgt_emb"], trg, axis=0) * math.sqrt(E) + pe[:T]

    # batch-first, lane-dense (N, L, E) layout for the whole stack
    x = src_emb.transpose(1, 0, 2)          # (N, S, E)
    y = tgt_emb.transpose(1, 0, 2)          # (N, T, E)

    src_kpm = _kpm_bias(src_padding_mask)
    tgt_kpm = _kpm_bias(tgt_padding_mask)
    mem_kpm = _kpm_bias(memory_key_padding_mask)

    # encoder (post-norm layers; final encoder LayerNorm fused into last FFN)
    n_enc = len(params["enc_layers"])
    for li, lp in enumerate(params["enc_layers"]):
        x = mha_block(x, x, src_mask, src_kpm, lp["self_attn"], H,
                      lp["ln1_g"], lp["ln1_b"])
        last = li == n_enc - 1
        x = ffn_block(x.reshape(N * S, E), lp["w1"], lp["b1"], lp["w2"], lp["b2"],
                      lp["ln2_g"], lp["ln2_b"],
                      extra_g=params["enc_norm_g"] if last else None,
                      extra_b=params["enc_norm_b"] if last else None,
                      ).reshape(N, S, E)
    if n_enc == 0:
        x = layernorm(x.reshape(N * S, E),
                      params["enc_norm_g"], params["enc_norm_b"]).reshape(N, S, E)
    memory = x

    # decoder (final decoder LayerNorm fused into the generator)
    for lp in params["dec_layers"]:
        y = mha_block(y, y, tgt_mask, tgt_kpm, lp["self_attn"], H,
                      lp["ln1_g"], lp["ln1_b"])
        y = mha_block(y, memory, None, mem_kpm, lp["cross_attn"], H,
                      lp["ln2_g"], lp["ln2_b"])
        y = ffn_block(y.reshape(N * T, E), lp["w1"], lp["b1"], lp["w2"], lp["b2"],
                      lp["ln3_g"], lp["ln3_b"]).reshape(N, T, E)

    logits = ln_linear(y.reshape(N * T, E),
                       params["dec_norm_g"], params["dec_norm_b"],
                       params["gen_w"], params["gen_b"])
    V = cfg["tgt_vocab_size"]
    return logits.reshape(N, T, V).transpose(1, 0, 2)     # (T, N, V)


# ---------------------------------------------------------------------------
# deterministic parameter initialization (synthetic, no checkpoint)
# ---------------------------------------------------------------------------

def init_params(key, cfg):
    E, dff = cfg["emb_size"], cfg["dim_feedforward"]
    keys = iter(jax.random.split(key, 512))

    def w(shape, scale=0.02):
        return jax.random.normal(next(keys), shape, jnp.float32) * scale

    def mha_p():
        return dict(wq=w((E, E)), bq=jnp.zeros((E,), jnp.float32),
                    wkv=w((E, 2 * E)), bkv=jnp.zeros((2 * E,), jnp.float32),
                    wo=w((E, E)), bo=jnp.zeros((E,), jnp.float32))

    def enc_layer_p():
        return dict(self_attn=mha_p(),
                    ln1_g=jnp.ones((E,), jnp.float32), ln1_b=jnp.zeros((E,), jnp.float32),
                    ln2_g=jnp.ones((E,), jnp.float32), ln2_b=jnp.zeros((E,), jnp.float32),
                    w1=w((E, dff)), b1=jnp.zeros((dff,), jnp.float32),
                    w2=w((dff, E)), b2=jnp.zeros((E,), jnp.float32))

    def dec_layer_p():
        d = enc_layer_p()
        d["cross_attn"] = mha_p()
        d["ln3_g"] = jnp.ones((E,), jnp.float32)
        d["ln3_b"] = jnp.zeros((E,), jnp.float32)
        return d

    return dict(
        src_emb=w((cfg["src_vocab_size"], E), 1.0),
        tgt_emb=w((cfg["tgt_vocab_size"], E), 1.0),
        enc_layers=[enc_layer_p() for _ in range(cfg["num_encoder_layers"])],
        dec_layers=[dec_layer_p() for _ in range(cfg["num_decoder_layers"])],
        enc_norm_g=jnp.ones((E,), jnp.float32), enc_norm_b=jnp.zeros((E,), jnp.float32),
        dec_norm_g=jnp.ones((E,), jnp.float32), dec_norm_b=jnp.zeros((E,), jnp.float32),
        gen_w=w((E, cfg["tgt_vocab_size"])),
        gen_b=jnp.zeros((cfg["tgt_vocab_size"],), jnp.float32),
        pos_embedding=make_pos_embedding(E, maxlen=5000),
    )


# ---------------------------------------------------------------------------
# main
# ---------------------------------------------------------------------------

if __name__ == "__main__":
    cfg = dict(num_encoder_layers=2, num_decoder_layers=2, emb_size=32, nhead=4,
               src_vocab_size=50, tgt_vocab_size=60, dim_feedforward=64, dropout=0.1)

    key = jax.random.PRNGKey(0)
    pkey, skey, tkey = jax.random.split(key, 3)
    params = init_params(pkey, cfg)

    S, T, N = 8, 8, 2
    src = jax.random.randint(skey, (S, N), 0, cfg["src_vocab_size"], dtype=jnp.int32)
    trg = jax.random.randint(tkey, (T, N), 0, cfg["tgt_vocab_size"], dtype=jnp.int32)

    # masks exactly as in the nmt_zh2en training script
    src_mask = jnp.zeros((S, S), jnp.float32)
    tgt_mask = jnp.where(jnp.triu(jnp.ones((T, T), bool), k=1),
                         -jnp.inf, 0.0).astype(jnp.float32)     # causal mask
    src_padding_mask = jnp.zeros((N, S), bool).at[1, S - 2:].set(True)
    tgt_padding_mask = jnp.zeros((N, T), bool).at[1, T - 1:].set(True)
    memory_key_padding_mask = src_padding_mask

    logits = seq2seq_transformer_forward(
        params, cfg, src, trg, src_mask, tgt_mask,
        src_padding_mask, tgt_padding_mask, memory_key_padding_mask)
    jax.block_until_ready(logits)

    assert logits.shape == (T, N, cfg["tgt_vocab_size"])
    assert bool(jnp.all(jnp.isfinite(logits)))
    print("KERNEL_OK")
</pallas_src>

<mosaic_0001>
module attributes {stable_mosaic.version = 11 : i64} {
  func.func @_mha_ln_kernel(%arg0: i32, %arg1: memref<2x8x32xf32, #tpu.memory_space<vmem>>, %arg2: memref<2x8x32xf32, #tpu.memory_space<vmem>>, %arg3: memref<32x32xbf16, #tpu.memory_space<vmem>>, %arg4: memref<1x32xf32, #tpu.memory_space<vmem>>, %arg5: memref<32x64xbf16, #tpu.memory_space<vmem>>, %arg6: memref<1x64xf32, #tpu.memory_space<vmem>>, %arg7: memref<32x32xbf16, #tpu.memory_space<vmem>>, %arg8: memref<1x32xf32, #tpu.memory_space<vmem>>, %arg9: memref<1x8x8xf32, #tpu.memory_space<vmem>>, %arg10: memref<2x1x8xf32, #tpu.memory_space<vmem>>, %arg11: memref<1x32xf32, #tpu.memory_space<vmem>>, %arg12: memref<1x32xf32, #tpu.memory_space<vmem>>, %arg13: memref<2x8x32xf32, #tpu.memory_space<vmem>>, %arg14: memref<2x8x32xf32, #tpu.memory_space<vmem>>) attributes {dimension_semantics = [#tpu.dimension_semantics<parallel>], iteration_bounds = array<i64: 1>, scalar_prefetch = 0 : i64, scratch_operands = 1 : i64, tpu.core_type = #tpu.core_type<tc>, window_params = [{transform_indices = @transform_0, window_bounds = array<i64: 2, 8, 32>}, {transform_indices = @transform_1, window_bounds = array<i64: 2, 8, 32>}, {pipeline_mode = #tpu.pipeline_mode<synchronous>, transform_indices = @transform_2, window_bounds = array<i64: 32, 32>}, {pipeline_mode = #tpu.pipeline_mode<synchronous>, transform_indices = @transform_3, window_bounds = array<i64: 1, 32>}, {pipeline_mode = #tpu.pipeline_mode<synchronous>, transform_indices = @transform_4, window_bounds = array<i64: 32, 64>}, {pipeline_mode = #tpu.pipeline_mode<synchronous>, transform_indices = @transform_5, window_bounds = array<i64: 1, 64>}, {pipeline_mode = #tpu.pipeline_mode<synchronous>, transform_indices = @transform_6, window_bounds = array<i64: 32, 32>}, {pipeline_mode = #tpu.pipeline_mode<synchronous>, transform_indices = @transform_7, window_bounds = array<i64: 1, 32>}, {pipeline_mode = #tpu.pipeline_mode<synchronous>, transform_indices = @transform_8, window_bounds = array<i64: 1, 8, 8>}, {transform_indices = @transform_9, window_bounds = array<i64: 2, 1, 8>}, {pipeline_mode = #tpu.pipeline_mode<synchronous>, transform_indices = @transform_10, window_bounds = array<i64: 1, 32>}, {pipeline_mode = #tpu.pipeline_mode<synchronous>, transform_indices = @transform_11, window_bounds = array<i64: 1, 32>}, {transform_indices = @transform_12, window_bounds = array<i64: 2, 8, 32>}]} {
    %c0 = arith.constant 0 : index
    %c0_0 = arith.constant 0 : index
    %c0_1 = arith.constant 0 : index
    %0 = vector.load %arg1[%c0, %c0_0, %c0_1] : memref<2x8x32xf32, #tpu.memory_space<vmem>>, vector<2x8x32xf32>
    %1 = vector.shape_cast %0 : vector<2x8x32xf32> to vector<16x32xf32>
    %c0_2 = arith.constant 0 : index
    %c0_3 = arith.constant 0 : index
    %c0_4 = arith.constant 0 : index
    %2 = vector.load %arg2[%c0_2, %c0_3, %c0_4] : memref<2x8x32xf32, #tpu.memory_space<vmem>>, vector<2x8x32xf32>
    %3 = vector.shape_cast %2 : vector<2x8x32xf32> to vector<16x32xf32>
    %4 = arith.truncf %1 : vector<16x32xf32> to vector<16x32xbf16>
    %c0_5 = arith.constant 0 : index
    %c0_6 = arith.constant 0 : index
    %5 = vector.load %arg3[%c0_5, %c0_6] : memref<32x32xbf16, #tpu.memory_space<vmem>>, vector<32x32xbf16>
    %cst = arith.constant dense<0.000000e+00> : vector<16x32xf32>
    %6 = tpu.matmul %4, %5, %cst {dimension_numbers = #tpu.dot_dimension_numbers<[1], [0], [0], [1], [0, 0, 1, 1], [], []>} : vector<16x32xbf16>, vector<32x32xbf16>, vector<16x32xf32> -> vector<16x32xf32>
    %c0_7 = arith.constant 0 : index
    %c0_8 = arith.constant 0 : index
    %7 = vector.load %arg4[%c0_7, %c0_8] : memref<1x32xf32, #tpu.memory_space<vmem>>, vector<1x32xf32>
    %8 = vector.broadcast %7 : vector<1x32xf32> to vector<16x32xf32>
    %9 = arith.addf %6, %8 : vector<16x32xf32>
    %10 = arith.truncf %3 : vector<16x32xf32> to vector<16x32xbf16>
    %c0_9 = arith.constant 0 : index
    %c0_10 = arith.constant 0 : index
    %11 = vector.load %arg5[%c0_9, %c0_10] : memref<32x64xbf16, #tpu.memory_space<vmem>>, vector<32x64xbf16>
    %cst_11 = arith.constant dense<0.000000e+00> : vector<16x64xf32>
    %12 = tpu.matmul %10, %11, %cst_11 {dimension_numbers = #tpu.dot_dimension_numbers<[1], [0], [0], [1], [0, 0, 1, 1], [], []>} : vector<16x32xbf16>, vector<32x64xbf16>, vector<16x64xf32> -> vector<16x64xf32>
    %c0_12 = arith.constant 0 : index
    %c0_13 = arith.constant 0 : index
    %13 = vector.load %arg6[%c0_12, %c0_13] : memref<1x64xf32, #tpu.memory_space<vmem>>, vector<1x64xf32>
    %14 = vector.broadcast %13 : vector<1x64xf32> to vector<16x64xf32>
    %15 = arith.addf %12, %14 : vector<16x64xf32>
    %cst_14 = arith.constant 0.353553385 : f32
    %16 = vector.broadcast %cst_14 : f32 to vector<16x32xf32>
    %17 = arith.mulf %9, %16 : vector<16x32xf32>
    %18 = vector.shape_cast %17 : vector<16x32xf32> to vector<2x8x32xf32>
    %19 = vector.shape_cast %15 : vector<16x64xf32> to vector<2x8x64xf32>
    %c0_15 = arith.constant 0 : index
    %c0_16 = arith.constant 0 : index
    %c0_17 = arith.constant 0 : index
    %20 = vector.load %arg9[%c0_15, %c0_16, %c0_17] : memref<1x8x8xf32, #tpu.memory_space<vmem>>, vector<1x8x8xf32>
    %21 = vector.shape_cast %20 : vector<1x8x8xf32> to vector<8x8xf32>
    %c0_18 = arith.constant 0 : index
    %c0_19 = arith.constant 0 : index
    %c0_20 = arith.constant 0 : index
    %22 = vector.load %arg10[%c0_18, %c0_19, %c0_20] : memref<2x1x8xf32, #tpu.memory_space<vmem>>, vector<1x1x8xf32>
    %23 = vector.shape_cast %22 : vector<1x1x8xf32> to vector<1x8xf32>
    %24 = vector.broadcast %23 : vector<1x8xf32> to vector<8x8xf32>
    %25 = arith.addf %21, %24 : vector<8x8xf32>
    %26 = vector.extract_strided_slice %18 {offsets = [0, 0, 0], sizes = [1, 8, 8], strides = [1, 1, 1]} : vector<2x8x32xf32> to vector<1x8x8xf32>
    %27 = vector.shape_cast %26 : vector<1x8x8xf32> to vector<8x8xf32>
    %28 = arith.truncf %27 : vector<8x8xf32> to vector<8x8xbf16>
    %29 = vector.extract_strided_slice %19 {offsets = [0, 0, 0], sizes = [1, 8, 8], strides = [1, 1, 1]} : vector<2x8x64xf32> to vector<1x8x8xf32>
    %30 = vector.shape_cast %29 : vector<1x8x8xf32> to vector<8x8xf32>
    %31 = arith.truncf %30 : vector<8x8xf32> to vector<8x8xbf16>
    %32 = vector.extract_strided_slice %19 {offsets = [0, 0, 32], sizes = [1, 8, 8], strides = [1, 1, 1]} : vector<2x8x64xf32> to vector<1x8x8xf32>
    %33 = vector.shape_cast %32 : vector<1x8x8xf32> to vector<8x8xf32>
    %34 = arith.truncf %33 : vector<8x8xf32> to vector<8x8xbf16>
    %cst_21 = arith.constant dense<0.000000e+00> : vector<8x8xf32>
    %35 = tpu.matmul %28, %31, %cst_21 {dimension_numbers = #tpu.dot_dimension_numbers<[1], [1], [0], [0], [0, 0, 1, 0], [], []>} : vector<8x8xbf16>, vector<8x8xbf16>, vector<8x8xf32> -> vector<8x8xf32>
    %36 = arith.addf %35, %25 : vector<8x8xf32>
    %cst_22 = arith.constant dense<0xFF800000> : vector<8xf32>
    %37 = vector.multi_reduction <maximumf>, %36, %cst_22 [1] : vector<8x8xf32> to vector<8xf32>
    %38 = vector.shape_cast %37 : vector<8xf32> to vector<8x1xf32>
    %39 = vector.broadcast %38 : vector<8x1xf32> to vector<8x8xf32>
    %40 = arith.subf %36, %39 : vector<8x8xf32>
    %41 = math.exp %40 : vector<8x8xf32>
    %cst_23 = arith.constant dense<0.000000e+00> : vector<8xf32>
    %42 = vector.multi_reduction <add>, %41, %cst_23 [1] : vector<8x8xf32> to vector<8xf32>
    %43 = vector.shape_cast %42 : vector<8xf32> to vector<8x1xf32>
    %44 = tpu.reciprocal %43 {approx = true} : vector<8x1xf32> -> vector<8x1xf32>
    %45 = vector.broadcast %44 : vector<8x1xf32> to vector<8x8xf32>
    %46 = arith.mulf %41, %45 : vector<8x8xf32>
    %47 = arith.truncf %46 : vector<8x8xf32> to vector<8x8xbf16>
    %cst_24 = arith.constant dense<0.000000e+00> : vector<8x8xf32>
    %48 = tpu.matmul %47, %34, %cst_24 {dimension_numbers = #tpu.dot_dimension_numbers<[1], [0], [0], [1], [0, 0, 1, 1], [], []>} : vector<8x8xbf16>, vector<8x8xbf16>, vector<8x8xf32> -> vector<8x8xf32>
    %c0_25 = arith.constant 0 : index
    %c0_26 = arith.constant 0 : index
    %c0_27 = arith.constant 0 : index
    %49 = vector.load %arg14[%c0_25, %c0_26, %c0_27] : memref<2x8x32xf32, #tpu.memory_space<vmem>>, vector<1x8x8xf32>
    %50 = vector.shape_cast %49 : vector<1x8x8xf32> to vector<8x8xf32>
    %51 = vector.shape_cast %48 : vector<8x8xf32> to vector<1x8x8xf32>
    tpu.vector_store %arg14[%c0_25, %c0_26, %c0_27], %51 {strides = array<i32>} : memref<2x8x32xf32, #tpu.memory_space<vmem>>, vector<1x8x8xf32>,
    %52 = vector.extract_strided_slice %18 {offsets = [0, 0, 8], sizes = [1, 8, 8], strides = [1, 1, 1]} : vector<2x8x32xf32> to vector<1x8x8xf32>
    %53 = vector.shape_cast %52 : vector<1x8x8xf32> to vector<8x8xf32>
    %54 = arith.truncf %53 : vector<8x8xf32> to vector<8x8xbf16>
    %55 = vector.extract_strided_slice %19 {offsets = [0, 0, 8], sizes = [1, 8, 8], strides = [1, 1, 1]} : vector<2x8x64xf32> to vector<1x8x8xf32>
    %56 = vector.shape_cast %55 : vector<1x8x8xf32> to vector<8x8xf32>
    %57 = arith.truncf %56 : vector<8x8xf32> to vector<8x8xbf16>
    %58 = vector.extract_strided_slice %19 {offsets = [0, 0, 40], sizes = [1, 8, 8], strides = [1, 1, 1]} : vector<2x8x64xf32> to vector<1x8x8xf32>
    %59 = vector.shape_cast %58 : vector<1x8x8xf32> to vector<8x8xf32>
    %60 = arith.truncf %59 : vector<8x8xf32> to vector<8x8xbf16>
    %cst_28 = arith.constant dense<0.000000e+00> : vector<8x8xf32>
    %61 = tpu.matmul %54, %57, %cst_28 {dimension_numbers = #tpu.dot_dimension_numbers<[1], [1], [0], [0], [0, 0, 1, 0], [], []>} : vector<8x8xbf16>, vector<8x8xbf16>, vector<8x8xf32> -> vector<8x8xf32>
    %62 = arith.addf %61, %25 : vector<8x8xf32>
    %cst_29 = arith.constant dense<0xFF800000> : vector<8xf32>
    %63 = vector.multi_reduction <maximumf>, %62, %cst_29 [1] : vector<8x8xf32> to vector<8xf32>
    %64 = vector.shape_cast %63 : vector<8xf32> to vector<8x1xf32>
    %65 = vector.broadcast %64 : vector<8x1xf32> to vector<8x8xf32>
    %66 = arith.subf %62, %65 : vector<8x8xf32>
    %67 = math.exp %66 : vector<8x8xf32>
    %cst_30 = arith.constant dense<0.000000e+00> : vector<8xf32>
    %68 = vector.multi_reduction <add>, %67, %cst_30 [1] : vector<8x8xf32> to vector<8xf32>
    %69 = vector.shape_cast %68 : vector<8xf32> to vector<8x1xf32>
    %70 = tpu.reciprocal %69 {approx = true} : vector<8x1xf32> -> vector<8x1xf32>
    %71 = vector.broadcast %70 : vector<8x1xf32> to vector<8x8xf32>
    %72 = arith.mulf %67, %71 : vector<8x8xf32>
    %73 = arith.truncf %72 : vector<8x8xf32> to vector<8x8xbf16>
    %cst_31 = arith.constant dense<0.000000e+00> : vector<8x8xf32>
    %74 = tpu.matmul %73, %60, %cst_31 {dimension_numbers = #tpu.dot_dimension_numbers<[1], [0], [0], [1], [0, 0, 1, 1], [], []>} : vector<8x8xbf16>, vector<8x8xbf16>, vector<8x8xf32> -> vector<8x8xf32>
    %c0_32 = arith.constant 0 : index
    %c0_33 = arith.constant 0 : index
    %c8 = arith.constant 8 : index
    %75 = vector.load %arg14[%c0_32, %c0_33, %c8] : memref<2x8x32xf32, #tpu.memory_space<vmem>>, vector<1x8x8xf32>
    %76 = vector.shape_cast %75 : vector<1x8x8xf32> to vector<8x8xf32>
    %77 = vector.shape_cast %74 : vector<8x8xf32> to vector<1x8x8xf32>
    tpu.vector_store %arg14[%c0_32, %c0_33, %c8], %77 {strides = array<i32>} : memref<2x8x32xf32, #tpu.memory_space<vmem>>, vector<1x8x8xf32>,
    %78 = vector.extract_strided_slice %18 {offsets = [0, 0, 16], sizes = [1, 8, 8], strides = [1, 1, 1]} : vector<2x8x32xf32> to vector<1x8x8xf32>
    %79 = vector.shape_cast %78 : vector<1x8x8xf32> to vector<8x8xf32>
    %80 = arith.truncf %79 : vector<8x8xf32> to vector<8x8xbf16>
    %81 = vector.extract_strided_slice %19 {offsets = [0, 0, 16], sizes = [1, 8, 8], strides = [1, 1, 1]} : vector<2x8x64xf32> to vector<1x8x8xf32>
    %82 = vector.shape_cast %81 : vector<1x8x8xf32> to vector<8x8xf32>
    %83 = arith.truncf %82 : vector<8x8xf32> to vector<8x8xbf16>
    %84 = vector.extract_strided_slice %19 {offsets = [0, 0, 48], sizes = [1, 8, 8], strides = [1, 1, 1]} : vector<2x8x64xf32> to vector<1x8x8xf32>
    %85 = vector.shape_cast %84 : vector<1x8x8xf32> to vector<8x8xf32>
    %86 = arith.truncf %85 : vector<8x8xf32> to vector<8x8xbf16>
    %cst_34 = arith.constant dense<0.000000e+00> : vector<8x8xf32>
    %87 = tpu.matmul %80, %83, %cst_34 {dimension_numbers = #tpu.dot_dimension_numbers<[1], [1], [0], [0], [0, 0, 1, 0], [], []>} : vector<8x8xbf16>, vector<8x8xbf16>, vector<8x8xf32> -> vector<8x8xf32>
    %88 = arith.addf %87, %25 : vector<8x8xf32>
    %cst_35 = arith.constant dense<0xFF800000> : vector<8xf32>
    %89 = vector.multi_reduction <maximumf>, %88, %cst_35 [1] : vector<8x8xf32> to vector<8xf32>
    %90 = vector.shape_cast %89 : vector<8xf32> to vector<8x1xf32>
    %91 = vector.broadcast %90 : vector<8x1xf32> to vector<8x8xf32>
    %92 = arith.subf %88, %91 : vector<8x8xf32>
    %93 = math.exp %92 : vector<8x8xf32>
    %cst_36 = arith.constant dense<0.000000e+00> : vector<8xf32>
    %94 = vector.multi_reduction <add>, %93, %cst_36 [1] : vector<8x8xf32> to vector<8xf32>
    %95 = vector.shape_cast %94 : vector<8xf32> to vector<8x1xf32>
    %96 = tpu.reciprocal %95 {approx = true} : vector<8x1xf32> -> vector<8x1xf32>
    %97 = vector.broadcast %96 : vector<8x1xf32> to vector<8x8xf32>
    %98 = arith.mulf %93, %97 : vector<8x8xf32>
    %99 = arith.truncf %98 : vector<8x8xf32> to vector<8x8xbf16>
    %cst_37 = arith.constant dense<0.000000e+00> : vector<8x8xf32>
    %100 = tpu.matmul %99, %86, %cst_37 {dimension_numbers = #tpu.dot_dimension_numbers<[1], [0], [0], [1], [0, 0, 1, 1], [], []>} : vector<8x8xbf16>, vector<8x8xbf16>, vector<8x8xf32> -> vector<8x8xf32>
    %c0_38 = arith.constant 0 : index
    %c0_39 = arith.constant 0 : index
    %c16 = arith.constant 16 : index
    %101 = vector.load %arg14[%c0_38, %c0_39, %c16] : memref<2x8x32xf32, #tpu.memory_space<vmem>>, vector<1x8x8xf32>
    %102 = vector.shape_cast %101 : vector<1x8x8xf32> to vector<8x8xf32>
    %103 = vector.shape_cast %100 : vector<8x8xf32> to vector<1x8x8xf32>
    tpu.vector_store %arg14[%c0_38, %c0_39, %c16], %103 {strides = array<i32>} : memref<2x8x32xf32, #tpu.memory_space<vmem>>, vector<1x8x8xf32>,
    %104 = vector.extract_strided_slice %18 {offsets = [0, 0, 24], sizes = [1, 8, 8], strides = [1, 1, 1]} : vector<2x8x32xf32> to vector<1x8x8xf32>
    %105 = vector.shape_cast %104 : vector<1x8x8xf32> to vector<8x8xf32>
    %106 = arith.truncf %105 : vector<8x8xf32> to vector<8x8xbf16>
    %107 = vector.extract_strided_slice %19 {offsets = [0, 0, 24], sizes = [1, 8, 8], strides = [1, 1, 1]} : vector<2x8x64xf32> to vector<1x8x8xf32>
    %108 = vector.shape_cast %107 : vector<1x8x8xf32> to vector<8x8xf32>
    %109 = arith.truncf %108 : vector<8x8xf32> to vector<8x8xbf16>
    %110 = vector.extract_strided_slice %19 {offsets = [0, 0, 56], sizes = [1, 8, 8], strides = [1, 1, 1]} : vector<2x8x64xf32> to vector<1x8x8xf32>
    %111 = vector.shape_cast %110 : vector<1x8x8xf32> to vector<8x8xf32>
    %112 = arith.truncf %111 : vector<8x8xf32> to vector<8x8xbf16>
    %cst_40 = arith.constant dense<0.000000e+00> : vector<8x8xf32>
    %113 = tpu.matmul %106, %109, %cst_40 {dimension_numbers = #tpu.dot_dimension_numbers<[1], [1], [0], [0], [0, 0, 1, 0], [], []>} : vector<8x8xbf16>, vector<8x8xbf16>, vector<8x8xf32> -> vector<8x8xf32>
    %114 = arith.addf %113, %25 : vector<8x8xf32>
    %cst_41 = arith.constant dense<0xFF800000> : vector<8xf32>
    %115 = vector.multi_reduction <maximumf>, %114, %cst_41 [1] : vector<8x8xf32> to vector<8xf32>
    %116 = vector.shape_cast %115 : vector<8xf32> to vector<8x1xf32>
    %117 = vector.broadcast %116 : vector<8x1xf32> to vector<8x8xf32>
    %118 = arith.subf %114, %117 : vector<8x8xf32>
    %119 = math.exp %118 : vector<8x8xf32>
    %cst_42 = arith.constant dense<0.000000e+00> : vector<8xf32>
    %120 = vector.multi_reduction <add>, %119, %cst_42 [1] : vector<8x8xf32> to vector<8xf32>
    %121 = vector.shape_cast %120 : vector<8xf32> to vector<8x1xf32>
    %122 = tpu.reciprocal %121 {approx = true} : vector<8x1xf32> -> vector<8x1xf32>
    %123 = vector.broadcast %122 : vector<8x1xf32> to vector<8x8xf32>
    %124 = arith.mulf %119, %123 : vector<8x8xf32>
    %125 = arith.truncf %124 : vector<8x8xf32> to vector<8x8xbf16>
    %cst_43 = arith.constant dense<0.000000e+00> : vector<8x8xf32>
    %126 = tpu.matmul %125, %112, %cst_43 {dimension_numbers = #tpu.dot_dimension_numbers<[1], [0], [0], [1], [0, 0, 1, 1], [], []>} : vector<8x8xbf16>, vector<8x8xbf16>, vector<8x8xf32> -> vector<8x8xf32>
    %c0_44 = arith.constant 0 : index
    %c0_45 = arith.constant 0 : index
    %c24 = arith.constant 24 : index
    %127 = vector.load %arg14[%c0_44, %c0_45, %c24] : memref<2x8x32xf32, #tpu.memory_space<vmem>>, vector<1x8x8xf32>
    %128 = vector.shape_cast %127 : vector<1x8x8xf32> to vector<8x8xf32>
    %129 = vector.shape_cast %126 : vector<8x8xf32> to vector<1x8x8xf32>
    tpu.vector_store %arg14[%c0_44, %c0_45, %c24], %129 {strides = array<i32>} : memref<2x8x32xf32, #tpu.memory_space<vmem>>, vector<1x8x8xf32>,
    %c1 = arith.constant 1 : index
    %c0_46 = arith.constant 0 : index
    %c0_47 = arith.constant 0 : index
    %130 = vector.load %arg10[%c1, %c0_46, %c0_47] : memref<2x1x8xf32, #tpu.memory_space<vmem>>, vector<1x1x8xf32>
    %131 = vector.shape_cast %130 : vector<1x1x8xf32> to vector<1x8xf32>
    %132 = vector.broadcast %131 : vector<1x8xf32> to vector<8x8xf32>
    %133 = arith.addf %21, %132 : vector<8x8xf32>
    %134 = vector.extract_strided_slice %18 {offsets = [1, 0, 0], sizes = [1, 8, 8], strides = [1, 1, 1]} : vector<2x8x32xf32> to vector<1x8x8xf32>
    %135 = vector.shape_cast %134 : vector<1x8x8xf32> to vector<8x8xf32>
    %136 = arith.truncf %135 : vector<8x8xf32> to vector<8x8xbf16>
    %137 = vector.extract_strided_slice %19 {offsets = [1, 0, 0], sizes = [1, 8, 8], strides = [1, 1, 1]} : vector<2x8x64xf32> to vector<1x8x8xf32>
    %138 = vector.shape_cast %137 : vector<1x8x8xf32> to vector<8x8xf32>
    %139 = arith.truncf %138 : vector<8x8xf32> to vector<8x8xbf16>
    %140 = vector.extract_strided_slice %19 {offsets = [1, 0, 32], sizes = [1, 8, 8], strides = [1, 1, 1]} : vector<2x8x64xf32> to vector<1x8x8xf32>
    %141 = vector.shape_cast %140 : vector<1x8x8xf32> to vector<8x8xf32>
    %142 = arith.truncf %141 : vector<8x8xf32> to vector<8x8xbf16>
    %cst_48 = arith.constant dense<0.000000e+00> : vector<8x8xf32>
    %143 = tpu.matmul %136, %139, %cst_48 {dimension_numbers = #tpu.dot_dimension_numbers<[1], [1], [0], [0], [0, 0, 1, 0], [], []>} : vector<8x8xbf16>, vector<8x8xbf16>, vector<8x8xf32> -> vector<8x8xf32>
    %144 = arith.addf %143, %133 : vector<8x8xf32>
    %cst_49 = arith.constant dense<0xFF800000> : vector<8xf32>
    %145 = vector.multi_reduction <maximumf>, %144, %cst_49 [1] : vector<8x8xf32> to vector<8xf32>
    %146 = vector.shape_cast %145 : vector<8xf32> to vector<8x1xf32>
    %147 = vector.broadcast %146 : vector<8x1xf32> to vector<8x8xf32>
    %148 = arith.subf %144, %147 : vector<8x8xf32>
    %149 = math.exp %148 : vector<8x8xf32>
    %cst_50 = arith.constant dense<0.000000e+00> : vector<8xf32>
    %150 = vector.multi_reduction <add>, %149, %cst_50 [1] : vector<8x8xf32> to vector<8xf32>
    %151 = vector.shape_cast %150 : vector<8xf32> to vector<8x1xf32>
    %152 = tpu.reciprocal %151 {approx = true} : vector<8x1xf32> -> vector<8x1xf32>
    %153 = vector.broadcast %152 : vector<8x1xf32> to vector<8x8xf32>
    %154 = arith.mulf %149, %153 : vector<8x8xf32>
    %155 = arith.truncf %154 : vector<8x8xf32> to vector<8x8xbf16>
    %cst_51 = arith.constant dense<0.000000e+00> : vector<8x8xf32>
    %156 = tpu.matmul %155, %142, %cst_51 {dimension_numbers = #tpu.dot_dimension_numbers<[1], [0], [0], [1], [0, 0, 1, 1], [], []>} : vector<8x8xbf16>, vector<8x8xbf16>, vector<8x8xf32> -> vector<8x8xf32>
    %c1_52 = arith.constant 1 : index
    %c0_53 = arith.constant 0 : index
    %c0_54 = arith.constant 0 : index
    %157 = vector.load %arg14[%c1_52, %c0_53, %c0_54] : memref<2x8x32xf32, #tpu.memory_space<vmem>>, vector<1x8x8xf32>
    %158 = vector.shape_cast %157 : vector<1x8x8xf32> to vector<8x8xf32>
    %159 = vector.shape_cast %156 : vector<8x8xf32> to vector<1x8x8xf32>
    tpu.vector_store %arg14[%c1_52, %c0_53, %c0_54], %159 {strides = array<i32>} : memref<2x8x32xf32, #tpu.memory_space<vmem>>, vector<1x8x8xf32>,
    %160 = vector.extract_strided_slice %18 {offsets = [1, 0, 8], sizes = [1, 8, 8], strides = [1, 1, 1]} : vector<2x8x32xf32> to vector<1x8x8xf32>
    %161 = vector.shape_cast %160 : vector<1x8x8xf32> to vector<8x8xf32>
    %162 = arith.truncf %161 : vector<8x8xf32> to vector<8x8xbf16>
    %163 = vector.extract_strided_slice %19 {offsets = [1, 0, 8], sizes = [1, 8, 8], strides = [1, 1, 1]} : vector<2x8x64xf32> to vector<1x8x8xf32>
    %164 = vector.shape_cast %163 : vector<1x8x8xf32> to vector<8x8xf32>
    %165 = arith.truncf %164 : vector<8x8xf32> to vector<8x8xbf16>
    %166 = vector.extract_strided_slice %19 {offsets = [1, 0, 40], sizes = [1, 8, 8], strides = [1, 1, 1]} : vector<2x8x64xf32> to vector<1x8x8xf32>
    %167 = vector.shape_cast %166 : vector<1x8x8xf32> to vector<8x8xf32>
    %168 = arith.truncf %167 : vector<8x8xf32> to vector<8x8xbf16>
    %cst_55 = arith.constant dense<0.000000e+00> : vector<8x8xf32>
    %169 = tpu.matmul %162, %165, %cst_55 {dimension_numbers = #tpu.dot_dimension_numbers<[1], [1], [0], [0], [0, 0, 1, 0], [], []>} : vector<8x8xbf16>, vector<8x8xbf16>, vector<8x8xf32> -> vector<8x8xf32>
    %170 = arith.addf %169, %133 : vector<8x8xf32>
    %cst_56 = arith.constant dense<0xFF800000> : vector<8xf32>
    %171 = vector.multi_reduction <maximumf>, %170, %cst_56 [1] : vector<8x8xf32> to vector<8xf32>
    %172 = vector.shape_cast %171 : vector<8xf32> to vector<8x1xf32>
    %173 = vector.broadcast %172 : vector<8x1xf32> to vector<8x8xf32>
    %174 = arith.subf %170, %173 : vector<8x8xf32>
    %175 = math.exp %174 : vector<8x8xf32>
    %cst_57 = arith.constant dense<0.000000e+00> : vector<8xf32>
    %176 = vector.multi_reduction <add>, %175, %cst_57 [1] : vector<8x8xf32> to vector<8xf32>
    %177 = vector.shape_cast %176 : vector<8xf32> to vector<8x1xf32>
    %178 = tpu.reciprocal %177 {approx = true} : vector<8x1xf32> -> vector<8x1xf32>
    %179 = vector.broadcast %178 : vector<8x1xf32> to vector<8x8xf32>
    %180 = arith.mulf %175, %179 : vector<8x8xf32>
    %181 = arith.truncf %180 : vector<8x8xf32> to vector<8x8xbf16>
    %cst_58 = arith.constant dense<0.000000e+00> : vector<8x8xf32>
    %182 = tpu.matmul %181, %168, %cst_58 {dimension_numbers = #tpu.dot_dimension_numbers<[1], [0], [0], [1], [0, 0, 1, 1], [], []>} : vector<8x8xbf16>, vector<8x8xbf16>, vector<8x8xf32> -> vector<8x8xf32>
    %c1_59 = arith.constant 1 : index
    %c0_60 = arith.constant 0 : index
    %c8_61 = arith.constant 8 : index
    %183 = vector.load %arg14[%c1_59, %c0_60, %c8_61] : memref<2x8x32xf32, #tpu.memory_space<vmem>>, vector<1x8x8xf32>
    %184 = vector.shape_cast %183 : vector<1x8x8xf32> to vector<8x8xf32>
    %185 = vector.shape_cast %182 : vector<8x8xf32> to vector<1x8x8xf32>
    tpu.vector_store %arg14[%c1_59, %c0_60, %c8_61], %185 {strides = array<i32>} : memref<2x8x32xf32, #tpu.memory_space<vmem>>, vector<1x8x8xf32>,
    %186 = vector.extract_strided_slice %18 {offsets = [1, 0, 16], sizes = [1, 8, 8], strides = [1, 1, 1]} : vector<2x8x32xf32> to vector<1x8x8xf32>
    %187 = vector.shape_cast %186 : vector<1x8x8xf32> to vector<8x8xf32>
    %188 = arith.truncf %187 : vector<8x8xf32> to vector<8x8xbf16>
    %189 = vector.extract_strided_slice %19 {offsets = [1, 0, 16], sizes = [1, 8, 8], strides = [1, 1, 1]} : vector<2x8x64xf32> to vector<1x8x8xf32>
    %190 = vector.shape_cast %189 : vector<1x8x8xf32> to vector<8x8xf32>
    %191 = arith.truncf %190 : vector<8x8xf32> to vector<8x8xbf16>
    %192 = vector.extract_strided_slice %19 {offsets = [1, 0, 48], sizes = [1, 8, 8], strides = [1, 1, 1]} : vector<2x8x64xf32> to vector<1x8x8xf32>
    %193 = vector.shape_cast %192 : vector<1x8x8xf32> to vector<8x8xf32>
    %194 = arith.truncf %193 : vector<8x8xf32> to vector<8x8xbf16>
    %cst_62 = arith.constant dense<0.000000e+00> : vector<8x8xf32>
    %195 = tpu.matmul %188, %191, %cst_62 {dimension_numbers = #tpu.dot_dimension_numbers<[1], [1], [0], [0], [0, 0, 1, 0], [], []>} : vector<8x8xbf16>, vector<8x8xbf16>, vector<8x8xf32> -> vector<8x8xf32>
    %196 = arith.addf %195, %133 : vector<8x8xf32>
    %cst_63 = arith.constant dense<0xFF800000> : vector<8xf32>
    %197 = vector.multi_reduction <maximumf>, %196, %cst_63 [1] : vector<8x8xf32> to vector<8xf32>
    %198 = vector.shape_cast %197 : vector<8xf32> to vector<8x1xf32>
    %199 = vector.broadcast %198 : vector<8x1xf32> to vector<8x8xf32>
    %200 = arith.subf %196, %199 : vector<8x8xf32>
    %201 = math.exp %200 : vector<8x8xf32>
    %cst_64 = arith.constant dense<0.000000e+00> : vector<8xf32>
    %202 = vector.multi_reduction <add>, %201, %cst_64 [1] : vector<8x8xf32> to vector<8xf32>
    %203 = vector.shape_cast %202 : vector<8xf32> to vector<8x1xf32>
    %204 = tpu.reciprocal %203 {approx = true} : vector<8x1xf32> -> vector<8x1xf32>
    %205 = vector.broadcast %204 : vector<8x1xf32> to vector<8x8xf32>
    %206 = arith.mulf %201, %205 : vector<8x8xf32>
    %207 = arith.truncf %206 : vector<8x8xf32> to vector<8x8xbf16>
    %cst_65 = arith.constant dense<0.000000e+00> : vector<8x8xf32>
    %208 = tpu.matmul %207, %194, %cst_65 {dimension_numbers = #tpu.dot_dimension_numbers<[1], [0], [0], [1], [0, 0, 1, 1], [], []>} : vector<8x8xbf16>, vector<8x8xbf16>, vector<8x8xf32> -> vector<8x8xf32>
    %c1_66 = arith.constant 1 : index
    %c0_67 = arith.constant 0 : index
    %c16_68 = arith.constant 16 : index
    %209 = vector.load %arg14[%c1_66, %c0_67, %c16_68] : memref<2x8x32xf32, #tpu.memory_space<vmem>>, vector<1x8x8xf32>
    %210 = vector.shape_cast %209 : vector<1x8x8xf32> to vector<8x8xf32>
    %211 = vector.shape_cast %208 : vector<8x8xf32> to vector<1x8x8xf32>
    tpu.vector_store %arg14[%c1_66, %c0_67, %c16_68], %211 {strides = array<i32>} : memref<2x8x32xf32, #tpu.memory_space<vmem>>, vector<1x8x8xf32>,
    %212 = vector.extract_strided_slice %18 {offsets = [1, 0, 24], sizes = [1, 8, 8], strides = [1, 1, 1]} : vector<2x8x32xf32> to vector<1x8x8xf32>
    %213 = vector.shape_cast %212 : vector<1x8x8xf32> to vector<8x8xf32>
    %214 = arith.truncf %213 : vector<8x8xf32> to vector<8x8xbf16>
    %215 = vector.extract_strided_slice %19 {offsets = [1, 0, 24], sizes = [1, 8, 8], strides = [1, 1, 1]} : vector<2x8x64xf32> to vector<1x8x8xf32>
    %216 = vector.shape_cast %215 : vector<1x8x8xf32> to vector<8x8xf32>
    %217 = arith.truncf %216 : vector<8x8xf32> to vector<8x8xbf16>
    %218 = vector.extract_strided_slice %19 {offsets = [1, 0, 56], sizes = [1, 8, 8], strides = [1, 1, 1]} : vector<2x8x64xf32> to vector<1x8x8xf32>
    %219 = vector.shape_cast %218 : vector<1x8x8xf32> to vector<8x8xf32>
    %220 = arith.truncf %219 : vector<8x8xf32> to vector<8x8xbf16>
    %cst_69 = arith.constant dense<0.000000e+00> : vector<8x8xf32>
    %221 = tpu.matmul %214, %217, %cst_69 {dimension_numbers = #tpu.dot_dimension_numbers<[1], [1], [0], [0], [0, 0, 1, 0], [], []>} : vector<8x8xbf16>, vector<8x8xbf16>, vector<8x8xf32> -> vector<8x8xf32>
    %222 = arith.addf %221, %133 : vector<8x8xf32>
    %cst_70 = arith.constant dense<0xFF800000> : vector<8xf32>
    %223 = vector.multi_reduction <maximumf>, %222, %cst_70 [1] : vector<8x8xf32> to vector<8xf32>
    %224 = vector.shape_cast %223 : vector<8xf32> to vector<8x1xf32>
    %225 = vector.broadcast %224 : vector<8x1xf32> to vector<8x8xf32>
    %226 = arith.subf %222, %225 : vector<8x8xf32>
    %227 = math.exp %226 : vector<8x8xf32>
    %cst_71 = arith.constant dense<0.000000e+00> : vector<8xf32>
    %228 = vector.multi_reduction <add>, %227, %cst_71 [1] : vector<8x8xf32> to vector<8xf32>
    %229 = vector.shape_cast %228 : vector<8xf32> to vector<8x1xf32>
    %230 = tpu.reciprocal %229 {approx = true} : vector<8x1xf32> -> vector<8x1xf32>
    %231 = vector.broadcast %230 : vector<8x1xf32> to vector<8x8xf32>
    %232 = arith.mulf %227, %231 : vector<8x8xf32>
    %233 = arith.truncf %232 : vector<8x8xf32> to vector<8x8xbf16>
    %cst_72 = arith.constant dense<0.000000e+00> : vector<8x8xf32>
    %234 = tpu.matmul %233, %220, %cst_72 {dimension_numbers = #tpu.dot_dimension_numbers<[1], [0], [0], [1], [0, 0, 1, 1], [], []>} : vector<8x8xbf16>, vector<8x8xbf16>, vector<8x8xf32> -> vector<8x8xf32>
    %c1_73 = arith.constant 1 : index
    %c0_74 = arith.constant 0 : index
    %c24_75 = arith.constant 24 : index
    %235 = vector.load %arg14[%c1_73, %c0_74, %c24_75] : memref<2x8x32xf32, #tpu.memory_space<vmem>>, vector<1x8x8xf32>
    %236 = vector.shape_cast %235 : vector<1x8x8xf32> to vector<8x8xf32>
    %237 = vector.shape_cast %234 : vector<8x8xf32> to vector<1x8x8xf32>
    tpu.vector_store %arg14[%c1_73, %c0_74, %c24_75], %237 {strides = array<i32>} : memref<2x8x32xf32, #tpu.memory_space<vmem>>, vector<1x8x8xf32>,
    %c0_76 = arith.constant 0 : index
    %c0_77 = arith.constant 0 : index
    %c0_78 = arith.constant 0 : index
    %238 = vector.load %arg14[%c0_76, %c0_77, %c0_78] : memref<2x8x32xf32, #tpu.memory_space<vmem>>, vector<2x8x32xf32>
    %239 = vector.shape_cast %238 : vector<2x8x32xf32> to vector<16x32xf32>
    %240 = arith.truncf %239 : vector<16x32xf32> to vector<16x32xbf16>
    %c0_79 = arith.constant 0 : index
    %c0_80 = arith.constant 0 : index
    %241 = vector.load %arg7[%c0_79, %c0_80] : memref<32x32xbf16, #tpu.memory_space<vmem>>, vector<32x32xbf16>
    %cst_81 = arith.constant dense<0.000000e+00> : vector<16x32xf32>
    %242 = tpu.matmul %240, %241, %cst_81 {dimension_numbers = #tpu.dot_dimension_numbers<[1], [0], [0], [1], [0, 0, 1, 1], [], []>} : vector<16x32xbf16>, vector<32x32xbf16>, vector<16x32xf32> -> vector<16x32xf32>
    %c0_82 = arith.constant 0 : index
    %c0_83 = arith.constant 0 : index
    %243 = vector.load %arg8[%c0_82, %c0_83] : memref<1x32xf32, #tpu.memory_space<vmem>>, vector<1x32xf32>
    %244 = vector.broadcast %243 : vector<1x32xf32> to vector<16x32xf32>
    %245 = arith.addf %242, %244 : vector<16x32xf32>
    %246 = arith.addf %1, %245 : vector<16x32xf32>
    %c0_84 = arith.constant 0 : index
    %c0_85 = arith.constant 0 : index
    %247 = vector.load %arg11[%c0_84, %c0_85] : memref<1x32xf32, #tpu.memory_space<vmem>>, vector<1x32xf32>
    %c0_86 = arith.constant 0 : index
    %c0_87 = arith.constant 0 : index
    %248 = vector.load %arg12[%c0_86, %c0_87] : memref<1x32xf32, #tpu.memory_space<vmem>>, vector<1x32xf32>
    %cst_88 = arith.constant dense<0.000000e+00> : vector<16xf32>
    %249 = vector.multi_reduction <add>, %246, %cst_88 [1] : vector<16x32xf32> to vector<16xf32>
    %250 = vector.shape_cast %249 : vector<16xf32> to vector<16x1xf32>
    %cst_89 = arith.constant 3.200000e+01 : f32
    %251 = vector.broadcast %cst_89 : f32 to vector<16x1xf32>
    %252 = arith.divf %250, %251 : vector<16x1xf32>
    %253 = vector.broadcast %252 : vector<16x1xf32> to vector<16x32xf32>
    %254 = arith.subf %246, %253 : vector<16x32xf32>
    %255 = arith.mulf %254, %254 : vector<16x32xf32>
    %cst_90 = arith.constant dense<0.000000e+00> : vector<16xf32>
    %256 = vector.multi_reduction <add>, %255, %cst_90 [1] : vector<16x32xf32> to vector<16xf32>
    %257 = vector.shape_cast %256 : vector<16xf32> to vector<16x1xf32>
    %cst_91 = arith.constant 3.200000e+01 : f32
    %258 = vector.broadcast %cst_91 : f32 to vector<16x1xf32>
    %259 = arith.divf %257, %258 : vector<16x1xf32>
    %260 = vector.broadcast %252 : vector<16x1xf32> to vector<16x32xf32>
    %261 = arith.subf %246, %260 : vector<16x32xf32>
    %cst_92 = arith.constant 9.99999974E-6 : f32
    %262 = vector.broadcast %cst_92 : f32 to vector<16x1xf32>
    %263 = arith.addf %259, %262 : vector<16x1xf32>
    %264 = math.rsqrt %263 : vector<16x1xf32>
    %265 = vector.broadcast %264 : vector<16x1xf32> to vector<16x32xf32>
    %266 = arith.mulf %261, %265 : vector<16x32xf32>
    %267 = vector.broadcast %247 : vector<1x32xf32> to vector<16x32xf32>
    %268 = arith.mulf %266, %267 : vector<16x32xf32>
    %269 = vector.broadcast %248 : vector<1x32xf32> to vector<16x32xf32>
    %270 = arith.addf %268, %269 : vector<16x32xf32>
    %271 = vector.shape_cast %270 : vector<16x32xf32> to vector<2x8x32xf32>
    %c0_93 = arith.constant 0 : index
    %c0_94 = arith.constant 0 : index
    %c0_95 = arith.constant 0 : index
    %272 = vector.load %arg13[%c0_93, %c0_94, %c0_95] : memref<2x8x32xf32, #tpu.memory_space<vmem>>, vector<2x8x32xf32>
    tpu.vector_store %arg13[%c0_93, %c0_94, %c0_95], %271 {strides = array<i32>} : memref<2x8x32xf32, #tpu.memory_space<vmem>>, vector<2x8x32xf32>,
    return
  }
  func.func @transform_0(%arg0: i32) -> (i32, i32, i32) {
    %c0_i32 = arith.constant 0 : i32
    %c0_i32_0 = arith.constant 0 : i32
    %c0_i32_1 = arith.constant 0 : i32
    return %arg0, %c0_i32, %c0_i32_0 : i32, i32, i32
  }
  func.func @transform_1(%arg0: i32) -> (i32, i32, i32) {
    %c0_i32 = arith.constant 0 : i32
    %c0_i32_0 = arith.constant 0 : i32
    %c0_i32_1 = arith.constant 0 : i32
    return %arg0, %c0_i32, %c0_i32_0 : i32, i32, i32
  }
  func.func @transform_2(%arg0: i32) -> (i32, i32) {
    %c0_i32 = arith.constant 0 : i32
    %c0_i32_0 = arith.constant 0 : i32
    %c0_i32_1 = arith.constant 0 : i32
    return %c0_i32, %c0_i32_0 : i32, i32
  }
  func.func @transform_3(%arg0: i32) -> (i32, i32) {
    %c0_i32 = arith.constant 0 : i32
    %c0_i32_0 = arith.constant 0 : i32
    %c0_i32_1 = arith.constant 0 : i32
    return %c0_i32, %c0_i32_0 : i32, i32
  }
  func.func @transform_4(%arg0: i32) -> (i32, i32) {
    %c0_i32 = arith.constant 0 : i32
    %c0_i32_0 = arith.constant 0 : i32
    %c0_i32_1 = arith.constant 0 : i32
    return %c0_i32, %c0_i32_0 : i32, i32
  }
  func.func @transform_5(%arg0: i32) -> (i32, i32) {
    %c0_i32 = arith.constant 0 : i32
    %c0_i32_0 = arith.constant 0 : i32
    %c0_i32_1 = arith.constant 0 : i32
    return %c0_i32, %c0_i32_0 : i32, i32
  }
  func.func @transform_6(%arg0: i32) -> (i32, i32) {
    %c0_i32 = arith.constant 0 : i32
    %c0_i32_0 = arith.constant 0 : i32
    %c0_i32_1 = arith.constant 0 : i32
    return %c0_i32, %c0_i32_0 : i32, i32
  }
  func.func @transform_7(%arg0: i32) -> (i32, i32) {
    %c0_i32 = arith.constant 0 : i32
    %c0_i32_0 = arith.constant 0 : i32
    %c0_i32_1 = arith.constant 0 : i32
    return %c0_i32, %c0_i32_0 : i32, i32
  }
  func.func @transform_8(%arg0: i32) -> (i32, i32, i32) {
    %c0_i32 = arith.constant 0 : i32
    %c0_i32_0 = arith.constant 0 : i32
    %c0_i32_1 = arith.constant 0 : i32
    %c0_i32_2 = arith.constant 0 : i32
    return %c0_i32, %c0_i32_0, %c0_i32_1 : i32, i32, i32
  }
  func.func @transform_9(%arg0: i32) -> (i32, i32, i32) {
    %c0_i32 = arith.constant 0 : i32
    %c0_i32_0 = arith.constant 0 : i32
    %c0_i32_1 = arith.constant 0 : i32
    return %arg0, %c0_i32, %c0_i32_0 : i32, i32, i32
  }
  func.func @transform_10(%arg0: i32) -> (i32, i32) {
    %c0_i32 = arith.constant 0 : i32
    %c0_i32_0 = arith.constant 0 : i32
    %c0_i32_1 = arith.constant 0 : i32
    return %c0_i32, %c0_i32_0 : i32, i32
  }
  func.func @transform_11(%arg0: i32) -> (i32, i32) {
    %c0_i32 = arith.constant 0 : i32
    %c0_i32_0 = arith.constant 0 : i32
    %c0_i32_1 = arith.constant 0 : i32
    return %c0_i32, %c0_i32_0 : i32, i32
  }
  func.func @transform_12(%arg0: i32) -> (i32, i32, i32) {
    %c0_i32 = arith.constant 0 : i32
    %c0_i32_0 = arith.constant 0 : i32
    %c0_i32_1 = arith.constant 0 : i32
    return %arg0, %c0_i32, %c0_i32_0 : i32, i32, i32
  }
}

</mosaic_0001>

<llo_original>
// kernel: tpu_custom_call.1
$region0: #{tpu_custom_call.1}
  #allocation0 [shape = 'u32[]', space=smem, size = 0x4, offset = 0x4, fixed_abs, tag = 'smem constant byte address 0x4 - core index']
  #allocation1 [shape = 'u32[144,128]{1,0:T(1,128)}', space=vmem, size = 0x12000, scoped, tag = 'internal scratch']
  #allocation2 [shape = 'f32[2,8,32]{2,1,0:T(8,128)}', space=vmem, size = 0x2000, scoped, tag = 'scratch operand']
  %s0 = inlined_call_operand.hbm [shape: f32[2,8,32], index: 0, kind: input, shape index: {}]
  %s1 = inlined_call_operand.hbm [shape: f32[2,8,32], index: 1, kind: input, shape index: {}]
  %s2 = inlined_call_operand.hbm [shape: bf16[32,32], index: 2, kind: input, shape index: {}]
  %s3 = inlined_call_operand.vmem [shape: f32[1,32], index: 3, kind: input, shape index: {}]
  %s4 = inlined_call_operand.hbm [shape: bf16[32,64], index: 4, kind: input, shape index: {}]
  %s5 = inlined_call_operand.vmem [shape: f32[1,64], index: 5, kind: input, shape index: {}]
  %s6 = inlined_call_operand.hbm [shape: bf16[32,32], index: 6, kind: input, shape index: {}]
  %s7 = inlined_call_operand.vmem [shape: f32[1,32], index: 7, kind: input, shape index: {}]
  %s8 = inlined_call_operand.vmem [shape: f32[1,8,8], index: 8, kind: input, shape index: {}]
  %s9 = inlined_call_operand.vmem [shape: f32[2,1,8], index: 9, kind: input, shape index: {}]
  %s10 = inlined_call_operand.vmem [shape: f32[1,32], index: 10, kind: input, shape index: {}]
  %s11 = inlined_call_operand.vmem [shape: f32[1,32], index: 11, kind: input, shape index: {}]
  %s12 = inlined_call_operand.hbm [shape: f32[2,8,32], index: 12, kind: output, shape index: {}]
  %s13 = sld [smem:[#allocation0]]
  $region78: #{tpu_custom_call.1} parent=0
    _
  %s15 = ssub.s32 1, %s13
  %s16 = scalar_select 0, %s15, %s13
  $region1: #{tpu_custom_call.1} parent=0
    #allocation3 [shape = 'u8[8192]{0}', space=vmem, size = 0x2000, scoped, tag = 'input window, operand 0, single buffered']
    #allocation4 [shape = 's32[1]{0}', space=sflag, size = 0x4, scoped, tag = 'scoped memory for tpu_custom_call.1']
    #allocation5 [shape = 's32[1]{0}', space=sflag, size = 0x4, scoped, tag = 'scoped memory for tpu_custom_call.1']
    #allocation6 [shape = 'u8[8192]{0}', space=vmem, size = 0x2000, scoped, tag = 'input window, operand 1, single buffered']
    #allocation7 [shape = 's32[1]{0}', space=sflag, size = 0x4, scoped, tag = 'scoped memory for tpu_custom_call.1']
    #allocation8 [shape = 'u8[8192]{0}', space=vmem, size = 0x2000, scoped, tag = 'input window, operand 2, single buffered']
    #allocation9 [shape = 'u8[8192]{0}', space=vmem, size = 0x2000, scoped, tag = 'input window, operand 4, single buffered']
    #allocation10 [shape = 's32[1]{0}', space=sflag, size = 0x4, scoped, tag = 'scoped memory for tpu_custom_call.1']
    #allocation11 [shape = 'u8[8192]{0}', space=vmem, size = 0x2000, scoped, tag = 'input window, operand 6, single buffered']
    #allocation12 [shape = 'u8[8192]{0}', space=vmem, size = 0x2000, scoped, tag = 'output window, operand 0, single buffered']
    %17 = vsyncpa [#allocation4], 0
    %18 = vsyncpa [#allocation7], 0
    %19 = vsyncpa [#allocation10], 0
    %20 = vsyncpa [#allocation5], 0
    // Predicated region
    $region2: #{tpu_custom_call.1} parent=1 // pred_check
      _
    $region3: #{tpu_custom_call.1} parent=1 // pred_check_branch
      %22 = sbr.rel (0) target = $region5
    $region4: #{tpu_custom_call.1} parent=1 // pred_region
      %s24 = ssub.s32 256, 256
      %25 = vsyncadd [#allocation4], %s24
      %s26 = sshll.u32 [#allocation3], 4
      %s27 = int_to_ptr.vmem [resolvable:$true] %s26
      %32 = dma.hbm_to_vmem [thread:$0]  %s0, 256, %s27, [#allocation4], 128, 128, 8
    $region5: #{tpu_custom_call.1} parent=1 // pred_fallthru
      _
    // Predicated region
    $region6: #{tpu_custom_call.1} parent=1 // pred_check
      _
    $region7: #{tpu_custom_call.1} parent=1 // pred_check_branch
      %34 = sbr.rel (0) target = $region9
    $region8: #{tpu_custom_call.1} parent=1 // pred_region
      %s36 = ssub.s32 256, 256
      %37 = vsyncadd [#allocation7], %s36
      %s38 = sshll.u32 [#allocation6], 4
      %s39 = int_to_ptr.vmem [resolvable:$true] %s38
      %44 = dma.hbm_to_vmem [thread:$0]  %s1, 256, %s39, [#allocation7], 128, 128, 8
    $region9: #{tpu_custom_call.1} parent=1 // pred_fallthru
      _
    // Predicated region
    $region10: #{tpu_custom_call.1} parent=1 // pred_check
      _
    $region11: #{tpu_custom_call.1} parent=1 // pred_check_branch
      %46 = sbr.rel (0) target = $region13
    $region12: #{tpu_custom_call.1} parent=1 // pred_region
      %s48 = ssub.s32 256, 256
      %49 = vsyncadd [#allocation7], %s48
      %s50 = sshll.u32 [#allocation8], 4
      %s51 = int_to_ptr.vmem [resolvable:$true] %s50
      %56 = dma.hbm_to_vmem [thread:$0]  %s2, 256, %s51, [#allocation7], 64, 64, 4
    $region13: #{tpu_custom_call.1} parent=1 // pred_fallthru
      _
    // Predicated region
    $region14: #{tpu_custom_call.1} parent=1 // pred_check
      _
    $region15: #{tpu_custom_call.1} parent=1 // pred_check_branch
      %58 = sbr.rel (0) target = $region17
    $region16: #{tpu_custom_call.1} parent=1 // pred_region
      _
    $region17: #{tpu_custom_call.1} parent=1 // pred_fallthru
      _
    // Predicated region
    $region18: #{tpu_custom_call.1} parent=1 // pred_check
      _
    $region19: #{tpu_custom_call.1} parent=1 // pred_check_branch
      %60 = sbr.rel (0) target = $region21
    $region20: #{tpu_custom_call.1} parent=1 // pred_region
      %s62 = ssub.s32 256, 256
      %63 = vsyncadd [#allocation10], %s62
      %s64 = sshll.u32 [#allocation9], 4
      %s65 = int_to_ptr.vmem [resolvable:$true] %s64
      %70 = dma.hbm_to_vmem [thread:$0]  %s4, 256, %s65, [#allocation10], 64, 64, 4
    $region21: #{tpu_custom_call.1} parent=1 // pred_fallthru
      _
    // Predicated region
    $region22: #{tpu_custom_call.1} parent=1 // pred_check
      _
    $region23: #{tpu_custom_call.1} parent=1 // pred_check_branch
      %72 = sbr.rel (0) target = $region25
    $region24: #{tpu_custom_call.1} parent=1 // pred_region
      _
    $region25: #{tpu_custom_call.1} parent=1 // pred_fallthru
      _
    // Predicated region
    $region26: #{tpu_custom_call.1} parent=1 // pred_check
      _
    $region27: #{tpu_custom_call.1} parent=1 // pred_check_branch
      %74 = sbr.rel (0) target = $region29
    $region28: #{tpu_custom_call.1} parent=1 // pred_region
      %s76 = ssub.s32 256, 256
      %77 = vsyncadd [#allocation10], %s76
      %s78 = sshll.u32 [#allocation11], 4
      %s79 = int_to_ptr.vmem [resolvable:$true] %s78
      %84 = dma.hbm_to_vmem [thread:$0]  %s6, 256, %s79, [#allocation10], 64, 64, 4
    $region29: #{tpu_custom_call.1} parent=1 // pred_fallthru
      _
    // Predicated region
    $region30: #{tpu_custom_call.1} parent=1 // pred_check
      _
    $region31: #{tpu_custom_call.1} parent=1 // pred_check_branch
      %86 = sbr.rel (0) target = $region33
    $region32: #{tpu_custom_call.1} parent=1 // pred_region
      _
    $region33: #{tpu_custom_call.1} parent=1 // pred_fallthru
      _
    // Predicated region
    $region34: #{tpu_custom_call.1} parent=1 // pred_check
      _
    $region35: #{tpu_custom_call.1} parent=1 // pred_check_branch
      %88 = sbr.rel (0) target = $region37
    $region36: #{tpu_custom_call.1} parent=1 // pred_region
      _
    $region37: #{tpu_custom_call.1} parent=1 // pred_fallthru
      _
    // Predicated region
    $region38: #{tpu_custom_call.1} parent=1 // pred_check
      _
    $region39: #{tpu_custom_call.1} parent=1 // pred_check_branch
      %90 = sbr.rel (0) target = $region41
    $region40: #{tpu_custom_call.1} parent=1 // pred_region
      _
    $region41: #{tpu_custom_call.1} parent=1 // pred_fallthru
      _
    // Predicated region
    $region42: #{tpu_custom_call.1} parent=1 // pred_check
      _
    $region43: #{tpu_custom_call.1} parent=1 // pred_check_branch
      %92 = sbr.rel (0) target = $region45
    $region44: #{tpu_custom_call.1} parent=1 // pred_region
      _
    $region45: #{tpu_custom_call.1} parent=1 // pred_fallthru
      _
    // Predicated region
    $region46: #{tpu_custom_call.1} parent=1 // pred_check
      _
    $region47: #{tpu_custom_call.1} parent=1 // pred_check_branch
      %94 = sbr.rel (0) target = $region49
    $region48: #{tpu_custom_call.1} parent=1 // pred_region
      _
    $region49: #{tpu_custom_call.1} parent=1 // pred_fallthru
      _
    // Predicated region
    $region50: #{tpu_custom_call.1} parent=1 // pred_check
      _
    $region51: #{tpu_custom_call.1} parent=1 // pred_check_branch
      %96 = sbr.rel (0) target = $region53
    $region52: #{tpu_custom_call.1} parent=1 // pred_region
      %97 = dma.done [#allocation4], 256
    $region53: #{tpu_custom_call.1} parent=1 // pred_fallthru
      _
    // Predicated region
    $region54: #{tpu_custom_call.1} parent=1 // pred_check
      _
    $region55: #{tpu_custom_call.1} parent=1 // pred_check_branch
      %99 = sbr.rel (0) target = $region57
    $region56: #{tpu_custom_call.1} parent=1 // pred_region
      %100 = dma.done [#allocation7], 256
    $region57: #{tpu_custom_call.1} parent=1 // pred_fallthru
      _
    // Predicated region
    $region58: #{tpu_custom_call.1} parent=1 // pred_check
      _
    $region59: #{tpu_custom_call.1} parent=1 // pred_check_branch
      %102 = sbr.rel (0) target = $region61
    $region60: #{tpu_custom_call.1} parent=1 // pred_region
      %103 = dma.done [#allocation7], 256
    $region61: #{tpu_custom_call.1} parent=1 // pred_fallthru
      _
    // Predicated region
    $region62: #{tpu_custom_call.1} parent=1 // pred_check
      _
    $region63: #{tpu_custom_call.1} parent=1 // pred_check_branch
      %105 = sbr.rel (0) target = $region65
    $region64: #{tpu_custom_call.1} parent=1 // pred_region
      %106 = dma.done [#allocation10], 256
    $region65: #{tpu_custom_call.1} parent=1 // pred_fallthru
      _
    // Predicated region
    $region66: #{tpu_custom_call.1} parent=1 // pred_check
      _
    $region67: #{tpu_custom_call.1} parent=1 // pred_check_branch
      %108 = sbr.rel (0) target = $region69
    $region68: #{tpu_custom_call.1} parent=1 // pred_region
      %109 = dma.done [#allocation10], 256
    $region69: #{tpu_custom_call.1} parent=1 // pred_fallthru
      _
    %v111 = vld [vmem:[#allocation3] sm:$0xff]
    %v112 = vld [vmem:[#allocation3 + $0x8] sm:$0xff]
    %v113 = vld [vmem:[#allocation6] sm:$0xff]
    %v114 = vld [vmem:[#allocation6 + $0x8] sm:$0xff]
    %v115 = vpack.c.bf16 %v112, %v111
    %v116 = vld [vmem:[#allocation8] sm:$0xf]
    %v117 = vld [vmem:[#allocation8 + $0x4] sm:$0xf]
    %v118 = vld [vmem:[#allocation8 + $0x8] sm:$0xf]
    %v119 = vld [vmem:[#allocation8 + $0xc] sm:$0xf]
    %v120 = vld [vmem:[%s3] sm:$0x1]
    %v122 = vlaneseq
    %v123 = vshrl.u32 %v122, 7
    %v124 = vsub.s32 0, %v123
    %v125 = vrot.slane %v120, %v124
    %v131 = vunpack.c.l.b16 %v116
    %v132 = vunpack.c.l.b16 %v117
    %v133 = vunpack.c.l.b16 %v118
    %v134 = vunpack.c.l.b16 %v119
    %v135 = vpack.c.b16 %v132, %v131
    %v136 = vpack.c.b16 %v134, %v133
    %vm139 = vcmask 261120
    %v141 = vsel %vm139, %v115, 0
    %143 = vmatprep.subr.bf16.mxu0 0
    %144 = vmatpush1.bf16.msra.mxu0 0
    %145 = vmatprep.subr.bf16.mxu0 0
    %146 = vmatpush1.bf16.msra.mxu0 0
    %147 = vmatprep.subr.bf16.mxu0 0
    %148 = vmatpush1.bf16.msra.mxu0 0
    %149 = vmatprep.subr.bf16.mxu0 0
    %150 = vmatpush1.bf16.msra.mxu0 0
    %151 = vmatprep.subr.bf16.mxu0 0
    %152 = vmatpush1.bf16.msra.mxu0 0
    %153 = vmatprep.subr.bf16.mxu0 0
    %154 = vmatpush1.bf16.msra.mxu0 0
    %155 = vmatprep.subr.bf16.mxu0 0
    %156 = vmatpush1.bf16.msra.mxu0 %v136
    %157 = vmatprep.subr.bf16.mxu0 0
    %158 = vmatpush1.bf16.msra.mxu0 %v135
    %159 = vmatprep.subr.bf16.mxu0 0
    %160 = vmatpush2.bf16.msra.mxu0 0
    %161 = vmatprep.subr.bf16.mxu0 0
    %162 = vmatpush2.bf16.msra.mxu0 0
    %163 = vmatprep.subr.bf16.mxu0 0
    %164 = vmatpush2.bf16.msra.mxu0 0
    %165 = vmatprep.subr.bf16.mxu0 0
    %166 = vmatpush2.bf16.msra.mxu0 0
    %167 = vmatprep.subr.bf16.mxu0 0
    %168 = vmatpush2.bf16.msra.mxu0 0
    %169 = vmatprep.subr.bf16.mxu0 0
    %170 = vmatpush2.bf16.msra.mxu0 0
    %171 = vmatprep.subr.bf16.mxu0 0
    %172 = vmatpush2.bf16.msra.mxu0 0
    %173 = vmatprep.subr.bf16.mxu0 0
    %174 = vmatpush2.bf16.msra.mxu0 0
    %175 = vmatprep.mubr.bf16.mxu0 0
    %176 = vmatmul.mubr.bf16.gmra.mxu0 %v141
    %v177 = vpop.f32.mrf.mxu0
    %v178 = vadd.f32 %v125, %v177
    %v179 = vpop.f32.mrf.mxu0
    %v180 = vpop.f32.mrf.mxu0
    %v181 = vadd.f32 %v125, %v180
    %v182 = vpop.f32.mrf.mxu0
    %183 = vdwg.mxu0
    %v184 = vpack.c.bf16 %v114, %v113
    %v185 = vld [vmem:[#allocation9] sm:$0xf]
    %v186 = vld [vmem:[#allocation9 + $0x4] sm:$0xf]
    %v187 = vld [vmem:[#allocation9 + $0x8] sm:$0xf]
    %v188 = vld [vmem:[#allocation9 + $0xc] sm:$0xf]
    %v189 = vld [vmem:[%s5] sm:$0x1]
    %v191 = vlaneseq
    %v192 = vshrl.u32 %v191, 7
    %v193 = vsub.s32 0, %v192
    %v194 = vrot.slane %v189, %v193
    %v200 = vunpack.c.l.b16 %v185
    %v201 = vunpack.c.l.b16 %v186
    %v202 = vunpack.c.l.b16 %v187
    %v203 = vunpack.c.l.b16 %v188
    %v204 = vpack.c.b16 %v201, %v200
    %v205 = vpack.c.b16 %v203, %v202
    %v209 = vsel %vm139, %v184, 0
    %211 = vmatprep.subr.bf16.mxu0 0
    %212 = vmatpush1.bf16.msra.mxu0 0
    %213 = vmatprep.subr.bf16.mxu0 0
    %214 = vmatpush1.bf16.msra.mxu0 0
    %215 = vmatprep.subr.bf16.mxu0 0
    %216 = vmatpush1.bf16.msra.mxu0 0
    %217 = vmatprep.subr.bf16.mxu0 0
    %218 = vmatpush1.bf16.msra.mxu0 0
    %219 = vmatprep.subr.bf16.mxu0 0
    %220 = vmatpush1.bf16.msra.mxu0 0
    %221 = vmatprep.subr.bf16.mxu0 0
    %222 = vmatpush1.bf16.msra.mxu0 0
    %223 = vmatprep.subr.bf16.mxu0 0
    %224 = vmatpush1.bf16.msra.mxu0 %v205
    %225 = vmatprep.subr.bf16.mxu0 0
    %226 = vmatpush1.bf16.msra.mxu0 %v204
    %227 = vmatprep.subr.bf16.mxu0 0
    %228 = vmatpush2.bf16.msra.mxu0 0
    %229 = vmatprep.subr.bf16.mxu0 0
    %230 = vmatpush2.bf16.msra.mxu0 0
    %231 = vmatprep.subr.bf16.mxu0 0
    %232 = vmatpush2.bf16.msra.mxu0 0
    %233 = vmatprep.subr.bf16.mxu0 0
    %234 = vmatpush2.bf16.msra.mxu0 0
    %235 = vmatprep.subr.bf16.mxu0 0
    %236 = vmatpush2.bf16.msra.mxu0 0
    %237 = vmatprep.subr.bf16.mxu0 0
    %238 = vmatpush2.bf16.msra.mxu0 0
    %239 = vmatprep.subr.bf16.mxu0 0
    %240 = vmatpush2.bf16.msra.mxu0 0
    %241 = vmatprep.subr.bf16.mxu0 0
    %242 = vmatpush2.bf16.msra.mxu0 0
    %243 = vmatprep.mubr.bf16.mxu0 0
    %244 = vmatmul.mubr.bf16.gmra.mxu0 %v209
    %v245 = vpop.f32.mrf.mxu0
    %v246 = vadd.f32 %v194, %v245
    %v247 = vpop.f32.mrf.mxu0
    %v248 = vpop.f32.mrf.mxu0
    %v249 = vadd.f32 %v194, %v248
    %v250 = vpop.f32.mrf.mxu0
    %251 = vdwg.mxu0
    %v252 = vmul.f32 %v178, 0.35355338
    %v253 = vmul.f32 %v181, 0.35355338
    %v254 = vld [vmem:[%s8] sm:$0xff]
    %v255 = vld [vmem:[%s9] sm:$0x1]
    %v257 = vlaneseq
    %v258 = vshrl.u32 %v257, 7
    %v259 = vsub.s32 0, %v258
    %v260 = vrot.slane %v255, %v259
    %v262 = vadd.f32 %v254, %v260
    %v263 = vpack.c.bf16 %v252, %v252
    %v264 = vpack.c.bf16 %v246, %v246
    %vm265 = vcmask 64512
    %v267 = vsel %vm265, %v263, 0
    %v270 = vsel %vm265, %v264, 0
    %272 = vmatprep.subr.bf16.mxu0 0
    %273 = vmatpush1.bf16.xpose.msra.mxu0 0
    %274 = vmatprep.subr.bf16.mxu0 0
    %275 = vmatpush1.bf16.xpose.msra.mxu0 0
    %276 = vmatprep.subr.bf16.mxu0 0
    %277 = vmatpush1.bf16.xpose.msra.mxu0 0
    %278 = vmatprep.subr.bf16.mxu0 0
    %279 = vmatpush1.bf16.xpose.msra.mxu0 0
    %280 = vmatprep.subr.bf16.mxu0 0
    %281 = vmatpush1.bf16.xpose.msra.mxu0 0
    %282 = vmatprep.subr.bf16.mxu0 0
    %283 = vmatpush1.bf16.xpose.msra.mxu0 0
    %284 = vmatprep.subr.bf16.mxu0 0
    %285 = vmatpush1.bf16.xpose.msra.mxu0 0
    %286 = vmatprep.subr.bf16.mxu0 0
    %287 = vmatpush1.bf16.xpose.msra.mxu0 %v270
    %288 = vmatprep.subr.bf16.mxu0 0
    %289 = vmatpush2.bf16.xpose.msra.mxu0 0
    %290 = vmatprep.subr.bf16.mxu0 0
    %291 = vmatpush2.bf16.xpose.msra.mxu0 0
    %292 = vmatprep.subr.bf16.mxu0 0
    %293 = vmatpush2.bf16.xpose.msra.mxu0 0
    %294 = vmatprep.subr.bf16.mxu0 0
    %295 = vmatpush2.bf16.xpose.msra.mxu0 0
    %296 = vmatprep.subr.bf16.mxu0 0
    %297 = vmatpush2.bf16.xpose.msra.mxu0 0
    %298 = vmatprep.subr.bf16.mxu0 0
    %299 = vmatpush2.bf16.xpose.msra.mxu0 0
    %300 = vmatprep.subr.bf16.mxu0 0
    %301 = vmatpush2.bf16.xpose.msra.mxu0 0
    %302 = vmatprep.subr.bf16.mxu0 0
    %303 = vmatpush2.bf16.xpose.msra.mxu0 0
    %304 = vmatprep.mubr.bf16.mxu0 0
    %305 = vmatmul.mubr.bf16.gmra.mxu0 %v267
    %v306 = vpop.f32.mrf.mxu0
    %v307 = vadd.f32 %v262, %v306
    %v308 = vpop.f32.mrf.mxu0
    %v309 = vpop.f32.mrf.mxu0
    %v310 = vpop.f32.mrf.mxu0
    %311 = vdwg.mxu0
    %v312 = vsel %vm265, %v307, -inf
    %313 = vmax.xlane.f32.xlu0 %v312
    %v314 = vpop.xlane.xlu0 %313
    %v315 = vsub.f32 %v307, %v314
    %v316 = vmul.f32 %v315, 1.442695
    %v317 = vpow.pop %v316
    %v318 = vsel %vm265, %v317, 0.0
    %319 = vadd.xlane.f32.xlu0 %v318
    %v320 = vpop.xlane.xlu0 %319
    %v321 = vrcp.pop %v320
    %v322 = vmul.f32 %v317, %v321
    %v323 = vpack.c.bf16 %v322, %v322
    %325 = vrot.lane.b32.xlu0 %v264, 96
    %v326 = vpop.permute.xlu0 %325
    %v328 = vsel %vm265, %v323, 0
    %vm330 = vcmask 1043456
    %v332 = vsel %vm330, %v326, 0
    %334 = vmatprep.subr.bf16.mxu0 0
    %335 = vmatpush1.bf16.msra.mxu0 0
    %336 = vmatprep.subr.bf16.mxu0 0
    %337 = vmatpush1.bf16.msra.mxu0 0
    %338 = vmatprep.subr.bf16.mxu0 0
    %339 = vmatpush1.bf16.msra.mxu0 0
    %340 = vmatprep.subr.bf16.mxu0 0
    %341 = vmatpush1.bf16.msra.mxu0 0
    %342 = vmatprep.subr.bf16.mxu0 0
    %343 = vmatpush1.bf16.msra.mxu0 0
    %344 = vmatprep.subr.bf16.mxu0 0
    %345 = vmatpush1.bf16.msra.mxu0 0
    %346 = vmatprep.subr.bf16.mxu0 0
    %347 = vmatpush1.bf16.msra.mxu0 0
    %348 = vmatprep.subr.bf16.mxu0 0
    %349 = vmatpush1.bf16.msra.mxu0 %v332
    %350 = vmatprep.subr.bf16.mxu0 0
    %351 = vmatpush2.bf16.msra.mxu0 0
    %352 = vmatprep.subr.bf16.mxu0 0
    %353 = vmatpush2.bf16.msra.mxu0 0
    %354 = vmatprep.subr.bf16.mxu0 0
    %355 = vmatpush2.bf16.msra.mxu0 0
    %356 = vmatprep.subr.bf16.mxu0 0
    %357 = vmatpush2.bf16.msra.mxu0 0
    %358 = vmatprep.subr.bf16.mxu0 0
    %359 = vmatpush2.bf16.msra.mxu0 0
    %360 = vmatprep.subr.bf16.mxu0 0
    %361 = vmatpush2.bf16.msra.mxu0 0
    %362 = vmatprep.subr.bf16.mxu0 0
    %363 = vmatpush2.bf16.msra.mxu0 0
    %364 = vmatprep.subr.bf16.mxu0 0
    %365 = vmatpush2.bf16.msra.mxu0 0
    %366 = vmatprep.mubr.bf16.mxu0 0
    %367 = vmatmul.mubr.bf16.gmra.mxu0 %v328
    %v368 = vpop.f32.mrf.mxu0
    %v369 = vadd.f32 0.0, %v368
    %v370 = vpop.f32.mrf.mxu0
    %v371 = vpop.f32.mrf.mxu0
    %v372 = vpop.f32.mrf.mxu0
    %373 = vdwg.mxu0
    %374 = vst.msk [vmem:[#allocation2] sm:$0xff] %vm265, %v369
    %376 = vrot.lane.b32.xlu0 %v263, 120
    %v377 = vpop.permute.xlu0 %376
    %378 = vrot.lane.b32.xlu0 %v264, 120
    %v379 = vpop.permute.xlu0 %378
    %v381 = vsel %vm265, %v377, 0
    %v384 = vsel %vm265, %v379, 0
    %386 = vmatprep.subr.bf16.mxu0 0
    %387 = vmatpush1.bf16.xpose.msra.mxu0 0
    %388 = vmatprep.subr.bf16.mxu0 0
    %389 = vmatpush1.bf16.xpose.msra.mxu0 0
    %390 = vmatprep.subr.bf16.mxu0 0
    %391 = vmatpush1.bf16.xpose.msra.mxu0 0
    %392 = vmatprep.subr.bf16.mxu0 0
    %393 = vmatpush1.bf16.xpose.msra.mxu0 0
    %394 = vmatprep.subr.bf16.mxu0 0
    %395 = vmatpush1.bf16.xpose.msra.mxu0 0
    %396 = vmatprep.subr.bf16.mxu0 0
    %397 = vmatpush1.bf16.xpose.msra.mxu0 0
    %398 = vmatprep.subr.bf16.mxu0 0
    %399 = vmatpush1.bf16.xpose.msra.mxu0 0
    %400 = vmatprep.subr.bf16.mxu0 0
    %401 = vmatpush1.bf16.xpose.msra.mxu0 %v384
    %402 = vmatprep.subr.bf16.mxu0 0
    %403 = vmatpush2.bf16.xpose.msra.mxu0 0
    %404 = vmatprep.subr.bf16.mxu0 0
    %405 = vmatpush2.bf16.xpose.msra.mxu0 0
    %406 = vmatprep.subr.bf16.mxu0 0
    %407 = vmatpush2.bf16.xpose.msra.mxu0 0
    %408 = vmatprep.subr.bf16.mxu0 0
    %409 = vmatpush2.bf16.xpose.msra.mxu0 0
    %410 = vmatprep.subr.bf16.mxu0 0
    %411 = vmatpush2.bf16.xpose.msra.mxu0 0
    %412 = vmatprep.subr.bf16.mxu0 0
    %413 = vmatpush2.bf16.xpose.msra.mxu0 0
    %414 = vmatprep.subr.bf16.mxu0 0
    %415 = vmatpush2.bf16.xpose.msra.mxu0 0
    %416 = vmatprep.subr.bf16.mxu0 0
    %417 = vmatpush2.bf16.xpose.msra.mxu0 0
    %418 = vmatprep.mubr.bf16.mxu0 0
    %419 = vmatmul.mubr.bf16.gmra.mxu0 %v381
    %v420 = vpop.f32.mrf.mxu0
    %v421 = vadd.f32 %v262, %v420
    %v422 = vpop.f32.mrf.mxu0
    %v423 = vpop.f32.mrf.mxu0
    %v424 = vpop.f32.mrf.mxu0
    %425 = vdwg.mxu0
    %v426 = vsel %vm265, %v421, -inf
    %427 = vmax.xlane.f32.xlu0 %v426
    %v428 = vpop.xlane.xlu0 %427
    %v429 = vsub.f32 %v421, %v428
    %v430 = vmul.f32 %v429, 1.442695
    %v431 = vpow.pop %v430
    %v432 = vsel %vm265, %v431, 0.0
    %433 = vadd.xlane.f32.xlu0 %v432
    %v434 = vpop.xlane.xlu0 %433
    %v435 = vrcp.pop %v434
    %v436 = vmul.f32 %v431, %v435
    %v437 = vpack.c.bf16 %v436, %v436
    %438 = vrot.lane.b32.xlu0 %v264, 88
    %v439 = vpop.permute.xlu0 %438
    %v441 = vsel %vm265, %v437, 0
    %v444 = vsel %vm330, %v439, 0
    %446 = vmatprep.subr.bf16.mxu0 0
    %447 = vmatpush1.bf16.msra.mxu0 0
    %448 = vmatprep.subr.bf16.mxu0 0
    %449 = vmatpush1.bf16.msra.mxu0 0
    %450 = vmatprep.subr.bf16.mxu0 0
    %451 = vmatpush1.bf16.msra.mxu0 0
    %452 = vmatprep.subr.bf16.mxu0 0
    %453 = vmatpush1.bf16.msra.mxu0 0
    %454 = vmatprep.subr.bf16.mxu0 0
    %455 = vmatpush1.bf16.msra.mxu0 0
    %456 = vmatprep.subr.bf16.mxu0 0
    %457 = vmatpush1.bf16.msra.mxu0 0
    %458 = vmatprep.subr.bf16.mxu0 0
    %459 = vmatpush1.bf16.msra.mxu0 0
    %460 = vmatprep.subr.bf16.mxu0 0
    %461 = vmatpush1.bf16.msra.mxu0 %v444
    %462 = vmatprep.subr.bf16.mxu0 0
    %463 = vmatpush2.bf16.msra.mxu0 0
    %464 = vmatprep.subr.bf16.mxu0 0
    %465 = vmatpush2.bf16.msra.mxu0 0
    %466 = vmatprep.subr.bf16.mxu0 0
    %467 = vmatpush2.bf16.msra.mxu0 0
    %468 = vmatprep.subr.bf16.mxu0 0
    %469 = vmatpush2.bf16.msra.mxu0 0
    %470 = vmatprep.subr.bf16.mxu0 0
    %471 = vmatpush2.bf16.msra.mxu0 0
    %472 = vmatprep.subr.bf16.mxu0 0
    %473 = vmatpush2.bf16.msra.mxu0 0
    %474 = vmatprep.subr.bf16.mxu0 0
    %475 = vmatpush2.bf16.msra.mxu0 0
    %476 = vmatprep.subr.bf16.mxu0 0
    %477 = vmatpush2.bf16.msra.mxu0 0
    %478 = vmatprep.mubr.bf16.mxu0 0
    %479 = vmatmul.mubr.bf16.gmra.mxu0 %v441
    %v480 = vpop.f32.mrf.mxu0
    %v481 = vadd.f32 0.0, %v480
    %v482 = vpop.f32.mrf.mxu0
    %v483 = vpop.f32.mrf.mxu0
    %v484 = vpop.f32.mrf.mxu0
    %485 = vdwg.mxu0
    %487 = vrot.lane.b32.xlu0 %v481, 8
    %v488 = vpop.permute.xlu0 %487
    %vm490 = vcmask 130112
    %491 = vst.msk [vmem:[#allocation2] sm:$0xff] %vm490, %v488
    %492 = vrot.lane.b32.xlu0 %v263, 112
    %v493 = vpop.permute.xlu0 %492
    %494 = vrot.lane.b32.xlu0 %v264, 112
    %v495 = vpop.permute.xlu0 %494
    %v497 = vsel %vm265, %v493, 0
    %v500 = vsel %vm265, %v495, 0
    %502 = vmatprep.subr.bf16.mxu0 0
    %503 = vmatpush1.bf16.xpose.msra.mxu0 0
    %504 = vmatprep.subr.bf16.mxu0 0
    %505 = vmatpush1.bf16.xpose.msra.mxu0 0
    %506 = vmatprep.subr.bf16.mxu0 0
    %507 = vmatpush1.bf16.xpose.msra.mxu0 0
    %508 = vmatprep.subr.bf16.mxu0 0
    %509 = vmatpush1.bf16.xpose.msra.mxu0 0
    %510 = vmatprep.subr.bf16.mxu0 0
    %511 = vmatpush1.bf16.xpose.msra.mxu0 0
    %512 = vmatprep.subr.bf16.mxu0 0
    %513 = vmatpush1.bf16.xpose.msra.mxu0 0
    %514 = vmatprep.subr.bf16.mxu0 0
    %515 = vmatpush1.bf16.xpose.msra.mxu0 0
    %516 = vmatprep.subr.bf16.mxu0 0
    %517 = vmatpush1.bf16.xpose.msra.mxu0 %v500
    %518 = vmatprep.subr.bf16.mxu0 0
    %519 = vmatpush2.bf16.xpose.msra.mxu0 0
    %520 = vmatprep.subr.bf16.mxu0 0
    %521 = vmatpush2.bf16.xpose.msra.mxu0 0
    %522 = vmatprep.subr.bf16.mxu0 0
    %523 = vmatpush2.bf16.xpose.msra.mxu0 0
    %524 = vmatprep.subr.bf16.mxu0 0
    %525 = vmatpush2.bf16.xpose.msra.mxu0 0
    %526 = vmatprep.subr.bf16.mxu0 0
    %527 = vmatpush2.bf16.xpose.msra.mxu0 0
    %528 = vmatprep.subr.bf16.mxu0 0
    %529 = vmatpush2.bf16.xpose.msra.mxu0 0
    %530 = vmatprep.subr.bf16.mxu0 0
    %531 = vmatpush2.bf16.xpose.msra.mxu0 0
    %532 = vmatprep.subr.bf16.mxu0 0
    %533 = vmatpush2.bf16.xpose.msra.mxu0 0
    %534 = vmatprep.mubr.bf16.mxu0 0
    %535 = vmatmul.mubr.bf16.gmra.mxu0 %v497
    %v536 = vpop.f32.mrf.mxu0
    %v537 = vadd.f32 %v262, %v536
    %v538 = vpop.f32.mrf.mxu0
    %v539 = vpop.f32.mrf.mxu0
    %v540 = vpop.f32.mrf.mxu0
    %541 = vdwg.mxu0
    %v542 = vsel %vm265, %v537, -inf
    %543 = vmax.xlane.f32.xlu0 %v542
    %v544 = vpop.xlane.xlu0 %543
    %v545 = vsub.f32 %v537, %v544
    %v546 = vmul.f32 %v545, 1.442695
    %v547 = vpow.pop %v546
    %v548 = vsel %vm265, %v547, 0.0
    %549 = vadd.xlane.f32.xlu0 %v548
    %v550 = vpop.xlane.xlu0 %549
    %v551 = vrcp.pop %v550
    %v552 = vmul.f32 %v547, %v551
    %v553 = vpack.c.bf16 %v552, %v552
    %554 = vrot.lane.b32.xlu0 %v264, 80
    %v555 = vpop.permute.xlu0 %554
    %v557 = vsel %vm265, %v553, 0
    %v560 = vsel %vm330, %v555, 0
    %562 = vmatprep.subr.bf16.mxu0 0
    %563 = vmatpush1.bf16.msra.mxu0 0
    %564 = vmatprep.subr.bf16.mxu0 0
    %565 = vmatpush1.bf16.msra.mxu0 0
    %566 = vmatprep.subr.bf16.mxu0 0
    %567 = vmatpush1.bf16.msra.mxu0 0
    %568 = vmatprep.subr.bf16.mxu0 0
    %569 = vmatpush1.bf16.msra.mxu0 0
    %570 = vmatprep.subr.bf16.mxu0 0
    %571 = vmatpush1.bf16.msra.mxu0 0
    %572 = vmatprep.subr.bf16.mxu0 0
    %573 = vmatpush1.bf16.msra.mxu0 0
    %574 = vmatprep.subr.bf16.mxu0 0
    %575 = vmatpush1.bf16.msra.mxu0 0
    %576 = vmatprep.subr.bf16.mxu0 0
    %577 = vmatpush1.bf16.msra.mxu0 %v560
    %578 = vmatprep.subr.bf16.mxu0 0
    %579 = vmatpush2.bf16.msra.mxu0 0
    %580 = vmatprep.subr.bf16.mxu0 0
    %581 = vmatpush2.bf16.msra.mxu0 0
    %582 = vmatprep.subr.bf16.mxu0 0
    %583 = vmatpush2.bf16.msra.mxu0 0
    %584 = vmatprep.subr.bf16.mxu0 0
    %585 = vmatpush2.bf16.msra.mxu0 0
    %586 = vmatprep.subr.bf16.mxu0 0
    %587 = vmatpush2.bf16.msra.mxu0 0
    %588 = vmatprep.subr.bf16.mxu0 0
    %589 = vmatpush2.bf16.msra.mxu0 0
    %590 = vmatprep.subr.bf16.mxu0 0
    %591 = vmatpush2.bf16.msra.mxu0 0
    %592 = vmatprep.subr.bf16.mxu0 0
    %593 = vmatpush2.bf16.msra.mxu0 0
    %594 = vmatprep.mubr.bf16.mxu0 0
    %595 = vmatmul.mubr.bf16.gmra.mxu0 %v557
    %v596 = vpop.f32.mrf.mxu0
    %v597 = vadd.f32 0.0, %v596
    %v598 = vpop.f32.mrf.mxu0
    %v599 = vpop.f32.mrf.mxu0
    %v600 = vpop.f32.mrf.mxu0
    %601 = vdwg.mxu0
    %603 = vrot.lane.b32.xlu0 %v597, 16
    %v604 = vpop.permute.xlu0 %603
    %vm606 = vcmask 195712
    %607 = vst.msk [vmem:[#allocation2] sm:$0xff] %vm606, %v604
    %608 = vrot.lane.b32.xlu0 %v263, 104
    %v609 = vpop.permute.xlu0 %608
    %610 = vrot.lane.b32.xlu0 %v264, 104
    %v611 = vpop.permute.xlu0 %610
    %v613 = vsel %vm265, %v609, 0
    %v616 = vsel %vm265, %v611, 0
    %618 = vmatprep.subr.bf16.mxu0 0
    %619 = vmatpush1.bf16.xpose.msra.mxu0 0
    %620 = vmatprep.subr.bf16.mxu0 0
    %621 = vmatpush1.bf16.xpose.msra.mxu0 0
    %622 = vmatprep.subr.bf16.mxu0 0
    %623 = vmatpush1.bf16.xpose.msra.mxu0 0
    %624 = vmatprep.subr.bf16.mxu0 0
    %625 = vmatpush1.bf16.xpose.msra.mxu0 0
    %626 = vmatprep.subr.bf16.mxu0 0
    %627 = vmatpush1.bf16.xpose.msra.mxu0 0
    %628 = vmatprep.subr.bf16.mxu0 0
    %629 = vmatpush1.bf16.xpose.msra.mxu0 0
    %630 = vmatprep.subr.bf16.mxu0 0
    %631 = vmatpush1.bf16.xpose.msra.mxu0 0
    %632 = vmatprep.subr.bf16.mxu0 0
    %633 = vmatpush1.bf16.xpose.msra.mxu0 %v616
    %634 = vmatprep.subr.bf16.mxu0 0
    %635 = vmatpush2.bf16.xpose.msra.mxu0 0
    %636 = vmatprep.subr.bf16.mxu0 0
    %637 = vmatpush2.bf16.xpose.msra.mxu0 0
    %638 = vmatprep.subr.bf16.mxu0 0
    %639 = vmatpush2.bf16.xpose.msra.mxu0 0
    %640 = vmatprep.subr.bf16.mxu0 0
    %641 = vmatpush2.bf16.xpose.msra.mxu0 0
    %642 = vmatprep.subr.bf16.mxu0 0
    %643 = vmatpush2.bf16.xpose.msra.mxu0 0
    %644 = vmatprep.subr.bf16.mxu0 0
    %645 = vmatpush2.bf16.xpose.msra.mxu0 0
    %646 = vmatprep.subr.bf16.mxu0 0
    %647 = vmatpush2.bf16.xpose.msra.mxu0 0
    %648 = vmatprep.subr.bf16.mxu0 0
    %649 = vmatpush2.bf16.xpose.msra.mxu0 0
    %650 = vmatprep.mubr.bf16.mxu0 0
    %651 = vmatmul.mubr.bf16.gmra.mxu0 %v613
    %v652 = vpop.f32.mrf.mxu0
    %v653 = vadd.f32 %v262, %v652
    %v654 = vpop.f32.mrf.mxu0
    %v655 = vpop.f32.mrf.mxu0
    %v656 = vpop.f32.mrf.mxu0
    %657 = vdwg.mxu0
    %v658 = vsel %vm265, %v653, -inf
    %659 = vmax.xlane.f32.xlu0 %v658
    %v660 = vpop.xlane.xlu0 %659
    %v661 = vsub.f32 %v653, %v660
    %v662 = vmul.f32 %v661, 1.442695
    %v663 = vpow.pop %v662
    %v664 = vsel %vm265, %v663, 0.0
    %665 = vadd.xlane.f32.xlu0 %v664
    %v666 = vpop.xlane.xlu0 %665
    %v667 = vrcp.pop %v666
    %v668 = vmul.f32 %v663, %v667
    %v669 = vpack.c.bf16 %v668, %v668
    %670 = vrot.lane.b32.xlu0 %v264, 72
    %v671 = vpop.permute.xlu0 %670
    %v673 = vsel %vm265, %v669, 0
    %v676 = vsel %vm330, %v671, 0
    %678 = vmatprep.subr.bf16.mxu0 0
    %679 = vmatpush1.bf16.msra.mxu0 0
    %680 = vmatprep.subr.bf16.mxu0 0
    %681 = vmatpush1.bf16.msra.mxu0 0
    %682 = vmatprep.subr.bf16.mxu0 0
    %683 = vmatpush1.bf16.msra.mxu0 0
    %684 = vmatprep.subr.bf16.mxu0 0
    %685 = vmatpush1.bf16.msra.mxu0 0
    %686 = vmatprep.subr.bf16.mxu0 0
    %687 = vmatpush1.bf16.msra.mxu0 0
    %688 = vmatprep.subr.bf16.mxu0 0
    %689 = vmatpush1.bf16.msra.mxu0 0
    %690 = vmatprep.subr.bf16.mxu0 0
    %691 = vmatpush1.bf16.msra.mxu0 0
    %692 = vmatprep.subr.bf16.mxu0 0
    %693 = vmatpush1.bf16.msra.mxu0 %v676
    %694 = vmatprep.subr.bf16.mxu0 0
    %695 = vmatpush2.bf16.msra.mxu0 0
    %696 = vmatprep.subr.bf16.mxu0 0
    %697 = vmatpush2.bf16.msra.mxu0 0
    %698 = vmatprep.subr.bf16.mxu0 0
    %699 = vmatpush2.bf16.msra.mxu0 0
    %700 = vmatprep.subr.bf16.mxu0 0
    %701 = vmatpush2.bf16.msra.mxu0 0
    %702 = vmatprep.subr.bf16.mxu0 0
    %703 = vmatpush2.bf16.msra.mxu0 0
    %704 = vmatprep.subr.bf16.mxu0 0
    %705 = vmatpush2.bf16.msra.mxu0 0
    %706 = vmatprep.subr.bf16.mxu0 0
    %707 = vmatpush2.bf16.msra.mxu0 0
    %708 = vmatprep.subr.bf16.mxu0 0
    %709 = vmatpush2.bf16.msra.mxu0 0
    %710 = vmatprep.mubr.bf16.mxu0 0
    %711 = vmatmul.mubr.bf16.gmra.mxu0 %v673
    %v712 = vpop.f32.mrf.mxu0
    %v713 = vadd.f32 0.0, %v712
    %v714 = vpop.f32.mrf.mxu0
    %v715 = vpop.f32.mrf.mxu0
    %v716 = vpop.f32.mrf.mxu0
    %717 = vdwg.mxu0
    %719 = vrot.lane.b32.xlu0 %v713, 24
    %v720 = vpop.permute.xlu0 %719
    %vm722 = vcmask 261312
    %723 = vst.msk [vmem:[#allocation2] sm:$0xff] %vm722, %v720
    %s724 = scalar_lea.vmem %s9, 1
    %v725 = vld [vmem:[%s724] sm:$0x1]
    %v727 = vlaneseq
    %v728 = vshrl.u32 %v727, 7
    %v729 = vsub.s32 0, %v728
    %v730 = vrot.slane %v725, %v729
    %v732 = vadd.f32 %v254, %v730
    %v733 = vpack.c.bf16 %v253, %v253
    %v734 = vpack.c.bf16 %v249, %v249
    %v736 = vsel %vm265, %v733, 0
    %v739 = vsel %vm265, %v734, 0
    %741 = vmatprep.subr.bf16.mxu0 0
    %742 = vmatpush1.bf16.xpose.msra.mxu0 0
    %743 = vmatprep.subr.bf16.mxu0 0
    %744 = vmatpush1.bf16.xpose.msra.mxu0 0
    %745 = vmatprep.subr.bf16.mxu0 0
    %746 = vmatpush1.bf16.xpose.msra.mxu0 0
    %747 = vmatprep.subr.bf16.mxu0 0
    %748 = vmatpush1.bf16.xpose.msra.mxu0 0
    %749 = vmatprep.subr.bf16.mxu0 0
    %750 = vmatpush1.bf16.xpose.msra.mxu0 0
    %751 = vmatprep.subr.bf16.mxu0 0
    %752 = vmatpush1.bf16.xpose.msra.mxu0 0
    %753 = vmatprep.subr.bf16.mxu0 0
    %754 = vmatpush1.bf16.xpose.msra.mxu0 0
    %755 = vmatprep.subr.bf16.mxu0 0
    %756 = vmatpush1.bf16.xpose.msra.mxu0 %v739
    %757 = vmatprep.subr.bf16.mxu0 0
    %758 = vmatpush2.bf16.xpose.msra.mxu0 0
    %759 = vmatprep.subr.bf16.mxu0 0
    %760 = vmatpush2.bf16.xpose.msra.mxu0 0
    %761 = vmatprep.subr.bf16.mxu0 0
    %762 = vmatpush2.bf16.xpose.msra.mxu0 0
    %763 = vmatprep.subr.bf16.mxu0 0
    %764 = vmatpush2.bf16.xpose.msra.mxu0 0
    %765 = vmatprep.subr.bf16.mxu0 0
    %766 = vmatpush2.bf16.xpose.msra.mxu0 0
    %767 = vmatprep.subr.bf16.mxu0 0
    %768 = vmatpush2.bf16.xpose.msra.mxu0 0
    %769 = vmatprep.subr.bf16.mxu0 0
    %770 = vmatpush2.bf16.xpose.msra.mxu0 0
    %771 = vmatprep.subr.bf16.mxu0 0
    %772 = vmatpush2.bf16.xpose.msra.mxu0 0
    %773 = vmatprep.mubr.bf16.mxu0 0
    %774 = vmatmul.mubr.bf16.gmra.mxu0 %v736
    %v775 = vpop.f32.mrf.mxu0
    %v776 = vadd.f32 %v732, %v775
    %v777 = vpop.f32.mrf.mxu0
    %v778 = vpop.f32.mrf.mxu0
    %v779 = vpop.f32.mrf.mxu0
    %780 = vdwg.mxu0
    %v781 = vsel %vm265, %v776, -inf
    %782 = vmax.xlane.f32.xlu0 %v781
    %v783 = vpop.xlane.xlu0 %782
    %v784 = vsub.f32 %v776, %v783
    %v785 = vmul.f32 %v784, 1.442695
    %v786 = vpow.pop %v785
    %v787 = vsel %vm265, %v786, 0.0
    %788 = vadd.xlane.f32.xlu0 %v787
    %v789 = vpop.xlane.xlu0 %788
    %v790 = vrcp.pop %v789
    %v791 = vmul.f32 %v786, %v790
    %v792 = vpack.c.bf16 %v791, %v791
    %794 = vrot.lane.b32.xlu0 %v734, 96
    %v795 = vpop.permute.xlu0 %794
    %v797 = vsel %vm265, %v792, 0
    %v800 = vsel %vm330, %v795, 0
    %802 = vmatprep.subr.bf16.mxu0 0
    %803 = vmatpush1.bf16.msra.mxu0 0
    %804 = vmatprep.subr.bf16.mxu0 0
    %805 = vmatpush1.bf16.msra.mxu0 0
    %806 = vmatprep.subr.bf16.mxu0 0
    %807 = vmatpush1.bf16.msra.mxu0 0
    %808 = vmatprep.subr.bf16.mxu0 0
    %809 = vmatpush1.bf16.msra.mxu0 0
    %810 = vmatprep.subr.bf16.mxu0 0
    %811 = vmatpush1.bf16.msra.mxu0 0
    %812 = vmatprep.subr.bf16.mxu0 0
    %813 = vmatpush1.bf16.msra.mxu0 0
    %814 = vmatprep.subr.bf16.mxu0 0
    %815 = vmatpush1.bf16.msra.mxu0 0
    %816 = vmatprep.subr.bf16.mxu0 0
    %817 = vmatpush1.bf16.msra.mxu0 %v800
    %818 = vmatprep.subr.bf16.mxu0 0
    %819 = vmatpush2.bf16.msra.mxu0 0
    %820 = vmatprep.subr.bf16.mxu0 0
    %821 = vmatpush2.bf16.msra.mxu0 0
    %822 = vmatprep.subr.bf16.mxu0 0
    %823 = vmatpush2.bf16.msra.mxu0 0
    %824 = vmatprep.subr.bf16.mxu0 0
    %825 = vmatpush2.bf16.msra.mxu0 0
    %826 = vmatprep.subr.bf16.mxu0 0
    %827 = vmatpush2.bf16.msra.mxu0 0
    %828 = vmatprep.subr.bf16.mxu0 0
    %829 = vmatpush2.bf16.msra.mxu0 0
    %830 = vmatprep.subr.bf16.mxu0 0
    %831 = vmatpush2.bf16.msra.mxu0 0
    %832 = vmatprep.subr.bf16.mxu0 0
    %833 = vmatpush2.bf16.msra.mxu0 0
    %834 = vmatprep.mubr.bf16.mxu0 0
    %835 = vmatmul.mubr.bf16.gmra.mxu0 %v797
    %v836 = vpop.f32.mrf.mxu0
    %v837 = vadd.f32 0.0, %v836
    %v838 = vpop.f32.mrf.mxu0
    %v839 = vpop.f32.mrf.mxu0
    %v840 = vpop.f32.mrf.mxu0
    %841 = vdwg.mxu0
    %s842 = scalar_lea.vmem [#allocation2], 8
    %843 = vst.msk [vmem:[%s842] sm:$0xff] %vm265, %v837
    %845 = vrot.lane.b32.xlu0 %v733, 120
    %v846 = vpop.permute.xlu0 %845
    %847 = vrot.lane.b32.xlu0 %v734, 120
    %v848 = vpop.permute.xlu0 %847
    %v850 = vsel %vm265, %v846, 0
    %v853 = vsel %vm265, %v848, 0
    %855 = vmatprep.subr.bf16.mxu0 0
    %856 = vmatpush1.bf16.xpose.msra.mxu0 0
    %857 = vmatprep.subr.bf16.mxu0 0
    %858 = vmatpush1.bf16.xpose.msra.mxu0 0
    %859 = vmatprep.subr.bf16.mxu0 0
    %860 = vmatpush1.bf16.xpose.msra.mxu0 0
    %861 = vmatprep.subr.bf16.mxu0 0
    %862 = vmatpush1.bf16.xpose.msra.mxu0 0
    %863 = vmatprep.subr.bf16.mxu0 0
    %864 = vmatpush1.bf16.xpose.msra.mxu0 0
    %865 = vmatprep.subr.bf16.mxu0 0
    %866 = vmatpush1.bf16.xpose.msra.mxu0 0
    %867 = vmatprep.subr.bf16.mxu0 0
    %868 = vmatpush1.bf16.xpose.msra.mxu0 0
    %869 = vmatprep.subr.bf16.mxu0 0
    %870 = vmatpush1.bf16.xpose.msra.mxu0 %v853
    %871 = vmatprep.subr.bf16.mxu0 0
    %872 = vmatpush2.bf16.xpose.msra.mxu0 0
    %873 = vmatprep.subr.bf16.mxu0 0
    %874 = vmatpush2.bf16.xpose.msra.mxu0 0
    %875 = vmatprep.subr.bf16.mxu0 0
    %876 = vmatpush2.bf16.xpose.msra.mxu0 0
    %877 = vmatprep.subr.bf16.mxu0 0
    %878 = vmatpush2.bf16.xpose.msra.mxu0 0
    %879 = vmatprep.subr.bf16.mxu0 0
    %880 = vmatpush2.bf16.xpose.msra.mxu0 0
    %881 = vmatprep.subr.bf16.mxu0 0
    %882 = vmatpush2.bf16.xpose.msra.mxu0 0
    %883 = vmatprep.subr.bf16.mxu0 0
    %884 = vmatpush2.bf16.xpose.msra.mxu0 0
    %885 = vmatprep.subr.bf16.mxu0 0
    %886 = vmatpush2.bf16.xpose.msra.mxu0 0
    %887 = vmatprep.mubr.bf16.mxu0 0
    %888 = vmatmul.mubr.bf16.gmra.mxu0 %v850
    %v889 = vpop.f32.mrf.mxu0
    %v890 = vadd.f32 %v732, %v889
    %v891 = vpop.f32.mrf.mxu0
    %v892 = vpop.f32.mrf.mxu0
    %v893 = vpop.f32.mrf.mxu0
    %894 = vdwg.mxu0
    %v895 = vsel %vm265, %v890, -inf
    %896 = vmax.xlane.f32.xlu0 %v895
    %v897 = vpop.xlane.xlu0 %896
    %v898 = vsub.f32 %v890, %v897
    %v899 = vmul.f32 %v898, 1.442695
    %v900 = vpow.pop %v899
    %v901 = vsel %vm265, %v900, 0.0
    %902 = vadd.xlane.f32.xlu0 %v901
    %v903 = vpop.xlane.xlu0 %902
    %v904 = vrcp.pop %v903
    %v905 = vmul.f32 %v900, %v904
    %v906 = vpack.c.bf16 %v905, %v905
    %907 = vrot.lane.b32.xlu0 %v734, 88
    %v908 = vpop.permute.xlu0 %907
    %v910 = vsel %vm265, %v906, 0
    %v913 = vsel %vm330, %v908, 0
    %915 = vmatprep.subr.bf16.mxu0 0
    %916 = vmatpush1.bf16.msra.mxu0 0
    %917 = vmatprep.subr.bf16.mxu0 0
    %918 = vmatpush1.bf16.msra.mxu0 0
    %919 = vmatprep.subr.bf16.mxu0 0
    %920 = vmatpush1.bf16.msra.mxu0 0
    %921 = vmatprep.subr.bf16.mxu0 0
    %922 = vmatpush1.bf16.msra.mxu0 0
    %923 = vmatprep.subr.bf16.mxu0 0
    %924 = vmatpush1.bf16.msra.mxu0 0
    %925 = vmatprep.subr.bf16.mxu0 0
    %926 = vmatpush1.bf16.msra.mxu0 0
    %927 = vmatprep.subr.bf16.mxu0 0
    %928 = vmatpush1.bf16.msra.mxu0 0
    %929 = vmatprep.subr.bf16.mxu0 0
    %930 = vmatpush1.bf16.msra.mxu0 %v913
    %931 = vmatprep.subr.bf16.mxu0 0
    %932 = vmatpush2.bf16.msra.mxu0 0
    %933 = vmatprep.subr.bf16.mxu0 0
    %934 = vmatpush2.bf16.msra.mxu0 0
    %935 = vmatprep.subr.bf16.mxu0 0
    %936 = vmatpush2.bf16.msra.mxu0 0
    %937 = vmatprep.subr.bf16.mxu0 0
    %938 = vmatpush2.bf16.msra.mxu0 0
    %939 = vmatprep.subr.bf16.mxu0 0
    %940 = vmatpush2.bf16.msra.mxu0 0
    %941 = vmatprep.subr.bf16.mxu0 0
    %942 = vmatpush2.bf16.msra.mxu0 0
    %943 = vmatprep.subr.bf16.mxu0 0
    %944 = vmatpush2.bf16.msra.mxu0 0
    %945 = vmatprep.subr.bf16.mxu0 0
    %946 = vmatpush2.bf16.msra.mxu0 0
    %947 = vmatprep.mubr.bf16.mxu0 0
    %948 = vmatmul.mubr.bf16.gmra.mxu0 %v910
    %v949 = vpop.f32.mrf.mxu0
    %v950 = vadd.f32 0.0, %v949
    %v951 = vpop.f32.mrf.mxu0
    %v952 = vpop.f32.mrf.mxu0
    %v953 = vpop.f32.mrf.mxu0
    %954 = vdwg.mxu0
    %956 = vrot.lane.b32.xlu0 %v950, 8
    %v957 = vpop.permute.xlu0 %956
    %959 = vst.msk [vmem:[%s842] sm:$0xff] %vm490, %v957
    %960 = vrot.lane.b32.xlu0 %v733, 112
    %v961 = vpop.permute.xlu0 %960
    %962 = vrot.lane.b32.xlu0 %v734, 112
    %v963 = vpop.permute.xlu0 %962
    %v965 = vsel %vm265, %v961, 0
    %v968 = vsel %vm265, %v963, 0
    %970 = vmatprep.subr.bf16.mxu0 0
    %971 = vmatpush1.bf16.xpose.msra.mxu0 0
    %972 = vmatprep.subr.bf16.mxu0 0
    %973 = vmatpush1.bf16.xpose.msra.mxu0 0
    %974 = vmatprep.subr.bf16.mxu0 0
    %975 = vmatpush1.bf16.xpose.msra.mxu0 0
    %976 = vmatprep.subr.bf16.mxu0 0
    %977 = vmatpush1.bf16.xpose.msra.mxu0 0
    %978 = vmatprep.subr.bf16.mxu0 0
    %979 = vmatpush1.bf16.xpose.msra.mxu0 0
    %980 = vmatprep.subr.bf16.mxu0 0
    %981 = vmatpush1.bf16.xpose.msra.mxu0 0
    %982 = vmatprep.subr.bf16.mxu0 0
    %983 = vmatpush1.bf16.xpose.msra.mxu0 0
    %984 = vmatprep.subr.bf16.mxu0 0
    %985 = vmatpush1.bf16.xpose.msra.mxu0 %v968
    %986 = vmatprep.subr.bf16.mxu0 0
    %987 = vmatpush2.bf16.xpose.msra.mxu0 0
    %988 = vmatprep.subr.bf16.mxu0 0
    %989 = vmatpush2.bf16.xpose.msra.mxu0 0
    %990 = vmatprep.subr.bf16.mxu0 0
    %991 = vmatpush2.bf16.xpose.msra.mxu0 0
    %992 = vmatprep.subr.bf16.mxu0 0
    %993 = vmatpush2.bf16.xpose.msra.mxu0 0
    %994 = vmatprep.subr.bf16.mxu0 0
    %995 = vmatpush2.bf16.xpose.msra.mxu0 0
    %996 = vmatprep.subr.bf16.mxu0 0
    %997 = vmatpush2.bf16.xpose.msra.mxu0 0
    %998 = vmatprep.subr.bf16.mxu0 0
    %999 = vmatpush2.bf16.xpose.msra.mxu0 0
    %1000 = vmatprep.subr.bf16.mxu0 0
    %1001 = vmatpush2.bf16.xpose.msra.mxu0 0
    %1002 = vmatprep.mubr.bf16.mxu0 0
    %1003 = vmatmul.mubr.bf16.gmra.mxu0 %v965
    %v1004 = vpop.f32.mrf.mxu0
    %v1005 = vadd.f32 %v732, %v1004
    %v1006 = vpop.f32.mrf.mxu0
    %v1007 = vpop.f32.mrf.mxu0
    %v1008 = vpop.f32.mrf.mxu0
    %1009 = vdwg.mxu0
    %v1010 = vsel %vm265, %v1005, -inf
    %1011 = vmax.xlane.f32.xlu0 %v1010
    %v1012 = vpop.xlane.xlu0 %1011
    %v1013 = vsub.f32 %v1005, %v1012
    %v1014 = vmul.f32 %v1013, 1.442695
    %v1015 = vpow.pop %v1014
    %v1016 = vsel %vm265, %v1015, 0.0
    %1017 = vadd.xlane.f32.xlu0 %v1016
    %v1018 = vpop.xlane.xlu0 %1017
    %v1019 = vrcp.pop %v1018
    %v1020 = vmul.f32 %v1015, %v1019
    %v1021 = vpack.c.bf16 %v1020, %v1020
    %1022 = vrot.lane.b32.xlu0 %v734, 80
    %v1023 = vpop.permute.xlu0 %1022
    %v1025 = vsel %vm265, %v1021, 0
    %v1028 = vsel %vm330, %v1023, 0
    %1030 = vmatprep.subr.bf16.mxu0 0
    %1031 = vmatpush1.bf16.msra.mxu0 0
    %1032 = vmatprep.subr.bf16.mxu0 0
    %1033 = vmatpush1.bf16.msra.mxu0 0
    %1034 = vmatprep.subr.bf16.mxu0 0
    %1035 = vmatpush1.bf16.msra.mxu0 0
    %1036 = vmatprep.subr.bf16.mxu0 0
    %1037 = vmatpush1.bf16.msra.mxu0 0
    %1038 = vmatprep.subr.bf16.mxu0 0
    %1039 = vmatpush1.bf16.msra.mxu0 0
    %1040 = vmatprep.subr.bf16.mxu0 0
    %1041 = vmatpush1.bf16.msra.mxu0 0
    %1042 = vmatprep.subr.bf16.mxu0 0
    %1043 = vmatpush1.bf16.msra.mxu0 0
    %1044 = vmatprep.subr.bf16.mxu0 0
    %1045 = vmatpush1.bf16.msra.mxu0 %v1028
    %1046 = vmatprep.subr.bf16.mxu0 0
    %1047 = vmatpush2.bf16.msra.mxu0 0
    %1048 = vmatprep.subr.bf16.mxu0 0
    %1049 = vmatpush2.bf16.msra.mxu0 0
    %1050 = vmatprep.subr.bf16.mxu0 0
    %1051 = vmatpush2.bf16.msra.mxu0 0
    %1052 = vmatprep.subr.bf16.mxu0 0
    %1053 = vmatpush2.bf16.msra.mxu0 0
    %1054 = vmatprep.subr.bf16.mxu0 0
    %1055 = vmatpush2.bf16.msra.mxu0 0
    %1056 = vmatprep.subr.bf16.mxu0 0
    %1057 = vmatpush2.bf16.msra.mxu0 0
    %1058 = vmatprep.subr.bf16.mxu0 0
    %1059 = vmatpush2.bf16.msra.mxu0 0
    %1060 = vmatprep.subr.bf16.mxu0 0
    %1061 = vmatpush2.bf16.msra.mxu0 0
    %1062 = vmatprep.mubr.bf16.mxu0 0
    %1063 = vmatmul.mubr.bf16.gmra.mxu0 %v1025
    %v1064 = vpop.f32.mrf.mxu0
    %v1065 = vadd.f32 0.0, %v1064
    %v1066 = vpop.f32.mrf.mxu0
    %v1067 = vpop.f32.mrf.mxu0
    %v1068 = vpop.f32.mrf.mxu0
    %1069 = vdwg.mxu0
    %1071 = vrot.lane.b32.xlu0 %v1065, 16
    %v1072 = vpop.permute.xlu0 %1071
    %1074 = vst.msk [vmem:[%s842] sm:$0xff] %vm606, %v1072
    %1075 = vrot.lane.b32.xlu0 %v733, 104
    %v1076 = vpop.permute.xlu0 %1075
    %1077 = vrot.lane.b32.xlu0 %v734, 104
    %v1078 = vpop.permute.xlu0 %1077
    %v1080 = vsel %vm265, %v1076, 0
    %v1083 = vsel %vm265, %v1078, 0
    %1085 = vmatprep.subr.bf16.mxu0 0
    %1086 = vmatpush1.bf16.xpose.msra.mxu0 0
    %1087 = vmatprep.subr.bf16.mxu0 0
    %1088 = vmatpush1.bf16.xpose.msra.mxu0 0
    %1089 = vmatprep.subr.bf16.mxu0 0
    %1090 = vmatpush1.bf16.xpose.msra.mxu0 0
    %1091 = vmatprep.subr.bf16.mxu0 0
    %1092 = vmatpush1.bf16.xpose.msra.mxu0 0
    %1093 = vmatprep.subr.bf16.mxu0 0
    %1094 = vmatpush1.bf16.xpose.msra.mxu0 0
    %1095 = vmatprep.subr.bf16.mxu0 0
    %1096 = vmatpush1.bf16.xpose.msra.mxu0 0
    %1097 = vmatprep.subr.bf16.mxu0 0
    %1098 = vmatpush1.bf16.xpose.msra.mxu0 0
    %1099 = vmatprep.subr.bf16.mxu0 0
    %1100 = vmatpush1.bf16.xpose.msra.mxu0 %v1083
    %1101 = vmatprep.subr.bf16.mxu0 0
    %1102 = vmatpush2.bf16.xpose.msra.mxu0 0
    %1103 = vmatprep.subr.bf16.mxu0 0
    %1104 = vmatpush2.bf16.xpose.msra.mxu0 0
    %1105 = vmatprep.subr.bf16.mxu0 0
    %1106 = vmatpush2.bf16.xpose.msra.mxu0 0
    %1107 = vmatprep.subr.bf16.mxu0 0
    %1108 = vmatpush2.bf16.xpose.msra.mxu0 0
    %1109 = vmatprep.subr.bf16.mxu0 0
    %1110 = vmatpush2.bf16.xpose.msra.mxu0 0
    %1111 = vmatprep.subr.bf16.mxu0 0
    %1112 = vmatpush2.bf16.xpose.msra.mxu0 0
    %1113 = vmatprep.subr.bf16.mxu0 0
    %1114 = vmatpush2.bf16.xpose.msra.mxu0 0
    %1115 = vmatprep.subr.bf16.mxu0 0
    %1116 = vmatpush2.bf16.xpose.msra.mxu0 0
    %1117 = vmatprep.mubr.bf16.mxu0 0
    %1118 = vmatmul.mubr.bf16.gmra.mxu0 %v1080
    %v1119 = vpop.f32.mrf.mxu0
    %v1120 = vadd.f32 %v732, %v1119
    %v1121 = vpop.f32.mrf.mxu0
    %v1122 = vpop.f32.mrf.mxu0
    %v1123 = vpop.f32.mrf.mxu0
    %1124 = vdwg.mxu0
    %v1125 = vsel %vm265, %v1120, -inf
    %1126 = vmax.xlane.f32.xlu0 %v1125
    %v1127 = vpop.xlane.xlu0 %1126
    %v1128 = vsub.f32 %v1120, %v1127
    %v1129 = vmul.f32 %v1128, 1.442695
    %v1130 = vpow.pop %v1129
    %v1131 = vsel %vm265, %v1130, 0.0
    %1132 = vadd.xlane.f32.xlu0 %v1131
    %v1133 = vpop.xlane.xlu0 %1132
    %v1134 = vrcp.pop %v1133
    %v1135 = vmul.f32 %v1130, %v1134
    %v1136 = vpack.c.bf16 %v1135, %v1135
    %1137 = vrot.lane.b32.xlu0 %v734, 72
    %v1138 = vpop.permute.xlu0 %1137
    %v1140 = vsel %vm265, %v1136, 0
    %v1143 = vsel %vm330, %v1138, 0
    %1145 = vmatprep.subr.bf16.mxu0 0
    %1146 = vmatpush1.bf16.msra.mxu0 0
    %1147 = vmatprep.subr.bf16.mxu0 0
    %1148 = vmatpush1.bf16.msra.mxu0 0
    %1149 = vmatprep.subr.bf16.mxu0 0
    %1150 = vmatpush1.bf16.msra.mxu0 0
    %1151 = vmatprep.subr.bf16.mxu0 0
    %1152 = vmatpush1.bf16.msra.mxu0 0
    %1153 = vmatprep.subr.bf16.mxu0 0
    %1154 = vmatpush1.bf16.msra.mxu0 0
    %1155 = vmatprep.subr.bf16.mxu0 0
    %1156 = vmatpush1.bf16.msra.mxu0 0
    %1157 = vmatprep.subr.bf16.mxu0 0
    %1158 = vmatpush1.bf16.msra.mxu0 0
    %1159 = vmatprep.subr.bf16.mxu0 0
    %1160 = vmatpush1.bf16.msra.mxu0 %v1143
    %1161 = vmatprep.subr.bf16.mxu0 0
    %1162 = vmatpush2.bf16.msra.mxu0 0
    %1163 = vmatprep.subr.bf16.mxu0 0
    %1164 = vmatpush2.bf16.msra.mxu0 0
    %1165 = vmatprep.subr.bf16.mxu0 0
    %1166 = vmatpush2.bf16.msra.mxu0 0
    %1167 = vmatprep.subr.bf16.mxu0 0
    %1168 = vmatpush2.bf16.msra.mxu0 0
    %1169 = vmatprep.subr.bf16.mxu0 0
    %1170 = vmatpush2.bf16.msra.mxu0 0
    %1171 = vmatprep.subr.bf16.mxu0 0
    %1172 = vmatpush2.bf16.msra.mxu0 0
    %1173 = vmatprep.subr.bf16.mxu0 0
    %1174 = vmatpush2.bf16.msra.mxu0 0
    %1175 = vmatprep.subr.bf16.mxu0 0
    %1176 = vmatpush2.bf16.msra.mxu0 0
    %1177 = vmatprep.mubr.bf16.mxu0 0
    %1178 = vmatmul.mubr.bf16.gmra.mxu0 %v1140
    %v1179 = vpop.f32.mrf.mxu0
    %v1180 = vadd.f32 0.0, %v1179
    %v1181 = vpop.f32.mrf.mxu0
    %v1182 = vpop.f32.mrf.mxu0
    %v1183 = vpop.f32.mrf.mxu0
    %1184 = vdwg.mxu0
    %1186 = vrot.lane.b32.xlu0 %v1180, 24
    %v1187 = vpop.permute.xlu0 %1186
    %1189 = vst.msk [vmem:[%s842] sm:$0xff] %vm722, %v1187
    %v1190 = vld [vmem:[#allocation2] sm:$0xff]
    %v1191 = vld [vmem:[#allocation2 + $0x8] sm:$0xff]
    %v1192 = vpack.c.bf16 %v1191, %v1190
    %v1193 = vld [vmem:[#allocation11] sm:$0xf]
    %v1194 = vld [vmem:[#allocation11 + $0x4] sm:$0xf]
    %v1195 = vld [vmem:[#allocation11 + $0x8] sm:$0xf]
    %v1196 = vld [vmem:[#allocation11 + $0xc] sm:$0xf]
    %v1197 = vld [vmem:[%s7] sm:$0x1]
    %v1199 = vlaneseq
    %v1200 = vshrl.u32 %v1199, 7
    %v1201 = vsub.s32 0, %v1200
    %v1202 = vrot.slane %v1197, %v1201
    %v1208 = vunpack.c.l.b16 %v1193
    %v1209 = vunpack.c.l.b16 %v1194
    %v1210 = vunpack.c.l.b16 %v1195
    %v1211 = vunpack.c.l.b16 %v1196
    %v1212 = vpack.c.b16 %v1209, %v1208
    %v1213 = vpack.c.b16 %v1211, %v1210
    %v1217 = vsel %vm139, %v1192, 0
    %1219 = vmatprep.subr.bf16.mxu0 0
    %1220 = vmatpush1.bf16.msra.mxu0 0
    %1221 = vmatprep.subr.bf16.mxu0 0
    %1222 = vmatpush1.bf16.msra.mxu0 0
    %1223 = vmatprep.subr.bf16.mxu0 0
    %1224 = vmatpush1.bf16.msra.mxu0 0
    %1225 = vmatprep.subr.bf16.mxu0 0
    %1226 = vmatpush1.bf16.msra.mxu0 0
    %1227 = vmatprep.subr.bf16.mxu0 0
    %1228 = vmatpush1.bf16.msra.mxu0 0
    %1229 = vmatprep.subr.bf16.mxu0 0
    %1230 = vmatpush1.bf16.msra.mxu0 0
    %1231 = vmatprep.subr.bf16.mxu0 0
    %1232 = vmatpush1.bf16.msra.mxu0 %v1213
    %1233 = vmatprep.subr.bf16.mxu0 0
    %1234 = vmatpush1.bf16.msra.mxu0 %v1212
    %1235 = vmatprep.subr.bf16.mxu0 0
    %1236 = vmatpush2.bf16.msra.mxu0 0
    %1237 = vmatprep.subr.bf16.mxu0 0
    %1238 = vmatpush2.bf16.msra.mxu0 0
    %1239 = vmatprep.subr.bf16.mxu0 0
    %1240 = vmatpush2.bf16.msra.mxu0 0
    %1241 = vmatprep.subr.bf16.mxu0 0
    %1242 = vmatpush2.bf16.msra.mxu0 0
    %1243 = vmatprep.subr.bf16.mxu0 0
    %1244 = vmatpush2.bf16.msra.mxu0 0
    %1245 = vmatprep.subr.bf16.mxu0 0
    %1246 = vmatpush2.bf16.msra.mxu0 0
    %1247 = vmatprep.subr.bf16.mxu0 0
    %1248 = vmatpush2.bf16.msra.mxu0 0
    %1249 = vmatprep.subr.bf16.mxu0 0
    %1250 = vmatpush2.bf16.msra.mxu0 0
    %1251 = vmatprep.mubr.bf16.mxu0 0
    %1252 = vmatmul.mubr.bf16.gmra.mxu0 %v1217
    %v1253 = vpop.f32.mrf.mxu0
    %v1254 = vadd.f32 %v1202, %v1253
    %v1255 = vpop.f32.mrf.mxu0
    %v1256 = vpop.f32.mrf.mxu0
    %v1257 = vadd.f32 %v1202, %v1256
    %v1258 = vpop.f32.mrf.mxu0
    %1259 = vdwg.mxu0
    %v1260 = vadd.f32 %v111, %v1254
    %v1261 = vadd.f32 %v112, %v1257
    %v1262 = vld [vmem:[%s10] sm:$0x1]
    %v1263 = vld [vmem:[%s11] sm:$0x1]
    %v1264 = vsel %vm139, %v1260, 0.0
    %1265 = vadd.xlane.f32.xlu0 %v1264
    %v1266 = vpop.xlane.xlu0 %1265
    %v1267 = vsel %vm139, %v1261, 0.0
    %1268 = vadd.xlane.f32.xlu0 %v1267
    %v1269 = vpop.xlane.xlu0 %1268
    %v1270 = vrcp.pop 32.0
    %v1271 = vmul.f32 %v1266, %v1270
    %v1272 = vmul.f32 %v1269, %v1270
    %v1273 = vsub.f32 %v1260, %v1271
    %v1274 = vsub.f32 %v1261, %v1272
    %v1275 = vmul.f32 %v1273, %v1273
    %v1276 = vmul.f32 %v1274, %v1274
    %v1277 = vsel %vm139, %v1275, 0.0
    %1278 = vadd.xlane.f32.xlu0 %v1277
    %v1279 = vpop.xlane.xlu0 %1278
    %v1280 = vsel %vm139, %v1276, 0.0
    %1281 = vadd.xlane.f32.xlu0 %v1280
    %v1282 = vpop.xlane.xlu0 %1281
    %v1283 = vmul.f32 %v1279, %v1270
    %v1284 = vmul.f32 %v1282, %v1270
    %v1285 = vadd.f32 %v1283, 1e-05
    %v1286 = vadd.f32 %v1284, 1e-05
    %v1287 = vrsqrt.pop %v1285
    %v1288 = vrsqrt.pop %v1286
    %v1289 = vmul.f32 %v1273, %v1287
    %v1290 = vmul.f32 %v1274, %v1288
    %v1292 = vlaneseq
    %v1293 = vshrl.u32 %v1292, 7
    %v1294 = vsub.s32 0, %v1293
    %v1295 = vrot.slane %v1262, %v1294
    %v1297 = vmul.f32 %v1289, %v1295
    %v1298 = vmul.f32 %v1290, %v1295
    %v1300 = vlaneseq
    %v1301 = vshrl.u32 %v1300, 7
    %v1302 = vsub.s32 0, %v1301
    %v1303 = vrot.slane %v1263, %v1302
    %v1305 = vadd.f32 %v1297, %v1303
    %v1306 = vadd.f32 %v1298, %v1303
    %1307 = vst.msk [vmem:[#allocation12] sm:$0xff] %vm139, %v1305
    %1308 = vst.msk [vmem:[#allocation12 + $0x8] sm:$0xff] %vm139, %v1306
    // Predicated region
    $region70: #{tpu_custom_call.1} parent=1 // pred_check
      _
    $region71: #{tpu_custom_call.1} parent=1 // pred_check_branch
      %1310 = sbr.rel (0) target = $region73
    $region72: #{tpu_custom_call.1} parent=1 // pred_region
      %s1312 = ssub.s32 256, 256
      %1313 = vsyncadd [#allocation5], %s1312
      %s1314 = sshll.u32 [#allocation12], 4
      %s1315 = int_to_ptr.vmem [resolvable:$true] %s1314
      %1320 = dma.vmem_to_hbm [thread:$0]  %s1315, 256, %s12, [#allocation5], 128, 128, 8
    $region73: #{tpu_custom_call.1} parent=1 // pred_fallthru
      _
    // Predicated region
    $region74: #{tpu_custom_call.1} parent=1 // pred_check
      _
    $region75: #{tpu_custom_call.1} parent=1 // pred_check_branch
      %1322 = sbr.rel (0) target = $region77
    $region76: #{tpu_custom_call.1} parent=1 // pred_region
      %1323 = dma.done [#allocation5], 256
    $region77: #{tpu_custom_call.1} parent=1 // pred_fallthru
      _
    %1324 = vsyncpa [#allocation4], 1
    %1325 = vsyncpa [#allocation7], 1
    %1326 = vsyncpa [#allocation10], 1
    %1327 = vsyncpa [#allocation5], 1

</llo_original>
